<compile_context>
chip_gen: v7x
topology: tpu7x:2x2x1
jax: 0.10.0
libtpu: 0.0.40
codegen_flags: <defaults>
</compile_context>

<pallas_src>
import functools

import jax
import jax.numpy as jnp
from jax import lax
from jax.experimental import pallas as pl
from jax.experimental.pallas import tpu as pltpu

EPS = 1e-5      # BatchNorm1d default eps
K = 5           # spline kernel_size per pseudo-dimension
DIM = 3
K3 = K ** DIM   # 125 weight matrices
K3P = 128       # basis padded to lane width (fused contract dim = Ci * 128)
LANE = 128


def _elu(x):
    # exp argument clamped so the discarded branch never produces inf.
    return jnp.where(x > 0, x, jnp.exp(jnp.minimum(x, 0.0)) - 1.0)


def _bn_train(h, gamma, beta):
    # BatchNorm1d (training mode): stats over the node axis, biased variance, f32.
    mu = jnp.mean(h, axis=0, keepdims=True)
    var = jnp.mean((h - mu) ** 2, axis=0, keepdims=True)
    return (h - mu) * lax.rsqrt(var + EPS) * gamma + beta


def residual_block_kernel(
    bf16_mul,
    x_ref, basis_ref, src_ref, dst_ref, invdeg_ref,
    w1_ref, r1rs_ref, b1_ref, g1_ref, be1_ref,
    w2_ref, r2_ref, b2_ref, g2_ref, be2_ref,
    ws_ref, bs_ref, gs_ref, bes_ref,
    out_ref,
):
    E = basis_ref.shape[0]          # number of edges
    N = x_ref.shape[0]              # number of nodes
    COUT = r2_ref.shape[0]          # real (unpadded) output channels
    COUT_P = out_ref.shape[1]       # lane-padded output channels (multiple of 128)

    X = x_ref[...]                  # [N, CIN] f32 node features
    Bv = basis_ref[...]             # [E, 128] spline basis (bf16 on v6e/v7x, f32 on v5e)
    inv_deg = invdeg_ref[...]       # [N, 1]  f32 (1/in-degree; 0-degree -> 1)

    # One-hot gather / scatter operators built in-kernel (pure iota/compare on the
    # VPU, then applied on the otherwise-idle MXU).  No per-edge serial loops.
    node_ids_e = lax.broadcasted_iota(jnp.int32, (E, N), 1)
    gath = (node_ids_e == src_ref[...]).astype(jnp.float32)      # [E, N]: row e picks src[e]
    node_ids_n = lax.broadcasted_iota(jnp.int32, (N, E), 0)
    scat = (node_ids_n == dst_ref[...]).astype(jnp.float32)      # [N, E]: scatter-add to dst

    def spline_messages(feat, w_ref):
        # Fused spline contraction: Z[e, i*128 + k] = feat[e, i] * B[e, k]
        # msgs = Z @ W  -- one large-contract MXU matmul, bf16 in / f32 acc.
        ci = feat.shape[1]
        z = jnp.concatenate([feat[:, i:i + 1] * Bv for i in range(ci)], axis=1)
        return jnp.dot(z.astype(jnp.bfloat16), w_ref[...],
                       preferred_element_type=jnp.float32)        # [E, COUT_P]

    # ---- gather x[src] once (f32-exact, reused by conv1 and shortcut) ----------
    Xsrc = jnp.dot(gath, X, preferred_element_type=jnp.float32)   # [E, CIN]
    xsrc_bf = Xsrc.astype(jnp.bfloat16)
    feat1 = xsrc_bf if bf16_mul else Xsrc                         # Z-build dtype path

    # ---- fused root matmuls: X @ [r1 | rs] fills the 256-wide MXU ---------------
    roots = jnp.dot(X.astype(jnp.bfloat16), r1rs_ref[...],
                    preferred_element_type=jnp.float32)           # [N, 2*COUT_P]
    root1, root_s = roots[:, :COUT_P], roots[:, COUT_P:]

    # ---- conv1 + shortcut messages, fused scatter-mean --------------------------
    msgs1 = spline_messages(feat1, w1_ref)                        # [E, COUT_P]
    msgs_s = jnp.dot(xsrc_bf, ws_ref[...],
                     preferred_element_type=jnp.float32)          # [E, COUT_P]
    agg_both = jnp.dot(scat, jnp.concatenate([msgs1, msgs_s], axis=1),
                       preferred_element_type=jnp.float32) * inv_deg
    agg1, agg_s = agg_both[:, :COUT_P], agg_both[:, COUT_P:]

    h = _elu(_bn_train(agg1 + root1 + b1_ref[...], g1_ref[...], be1_ref[...]))
    sc = _bn_train(agg_s + root_s + bs_ref[...], gs_ref[...], bes_ref[...])

    # ---- conv2: gather h[src] lane-dense, slice to COUT only on the value -------
    Hsrc = jnp.dot(gath, h, preferred_element_type=jnp.float32)   # [E, COUT_P]
    feat2 = Hsrc[:, :COUT]
    if bf16_mul:
        feat2 = feat2.astype(jnp.bfloat16)
    msgs2 = spline_messages(feat2, w2_ref)                        # [E, COUT_P]
    agg2 = jnp.dot(scat, msgs2, preferred_element_type=jnp.float32) * inv_deg
    root2 = jnp.dot(h[:, :COUT].astype(jnp.bfloat16), r2_ref[...],
                    preferred_element_type=jnp.float32)
    h2 = _bn_train(agg2 + root2 + b2_ref[...], g2_ref[...], be2_ref[...])

    out_ref[...] = _elu(h2 + sc)                                  # lane-dense store


def _spline_basis(edge_attr):
    """Degree-1 open B-spline basis, kernel_size=5, dim=3, padded [E, 128] f32."""
    E = edge_attr.shape[0]
    v = jnp.clip(edge_attr, 0.0, 1.0) * (K - 1)           # [E, 3]
    i0f = jnp.floor(v)
    fr = v - i0f
    i0 = i0f.astype(jnp.int32)
    i1 = jnp.minimum(i0 + 1, K - 1)
    idx = jnp.arange(K)
    bd = (jnp.equal(idx[None, None, :], i0[:, :, None]) * (1.0 - fr)[:, :, None]
          + jnp.equal(idx[None, None, :], i1[:, :, None]) * fr[:, :, None])
    # flat weight index = d0 + 5*d1 + 25*d2 (torch_spline_conv ordering)
    B = (bd[:, 2, :, None, None] * bd[:, 1, None, :, None]
         * bd[:, 0, None, None, :]).reshape(E, K3).astype(jnp.float32)
    return jnp.pad(B, ((0, 0), (0, K3P - K3)))             # pad 125 -> 128 lanes


def _prep_params(params, cout_p):
    """Pad out-channels to lane width, reshape spline weights, cast matmul weights to bf16.

    NOTE: padded gamma/beta lanes MUST stay zero so padded channels are exactly 0
    through BatchNorm/ELU; do not pad gamma with ones.
    """
    def pad_last(a):
        return jnp.pad(a, [(0, 0)] * (a.ndim - 1) + [(0, cout_p - a.shape[-1])])

    def prep_w(w):   # [Ci, 125, Cout] -> [Ci*128, cout_p] bf16
        w = jnp.pad(w, ((0, 0), (0, K3P - K3), (0, cout_p - w.shape[-1])))
        return w.reshape(w.shape[0] * K3P, cout_p).astype(jnp.bfloat16)

    prep_r = lambda r: pad_last(r).astype(jnp.bfloat16)    # root / 1x1 weights
    prep_v = lambda v: pad_last(v).astype(jnp.float32)     # bias / gamma / beta

    # Fuse the two root weights that share the CIN contract dim: X @ [r1 | rs].
    r1rs = jnp.concatenate([prep_r(params["r1"]), prep_r(params["rs"])], axis=1)

    return (prep_w(params["w1"]), r1rs, prep_v(params["b1"]),
            prep_v(params["g1"]), prep_v(params["be1"]),
            prep_w(params["w2"]), prep_r(params["r2"]), prep_v(params["b2"]),
            prep_v(params["g2"]), prep_v(params["be2"]),
            prep_r(params["ws"]), prep_v(params["bs"]),
            prep_v(params["gs"]), prep_v(params["bes"]))


def residual_block(x, edge_index, edge_attr, params):
    N, CIN = x.shape
    E = edge_index.shape[1]
    COUT = params["b1"].shape[-1]
    COUT_P = ((COUT + LANE - 1) // LANE) * LANE            # lane-dense channel axis

    # v5e has no bf16 VALU: keep the Z-build multiply in f32 there, pack to bf16
    # only for the matmul.  v6e/v7x multiply natively in bf16 (halves Z VMEM).
    kind = jax.devices()[0].device_kind.lower()
    bf16_mul = "v5" not in kind

    src = edge_index[0].astype(jnp.int32).reshape(E, 1)    # column: compares vs node iota
    dst = edge_index[1].astype(jnp.int32).reshape(1, E)    # row:    compares vs node iota

    # 1/in-degree for scatter-mean (f32; zero-degree nodes -> factor 1, agg stays 0).
    deg = jnp.zeros((N,), jnp.float32).at[edge_index[1]].add(1.0)
    inv_deg = (1.0 / jnp.maximum(deg, 1.0)).reshape(N, 1)

    basis = _spline_basis(edge_attr)
    if bf16_mul:
        basis = basis.astype(jnp.bfloat16)

    w_args = _prep_params(params, COUT_P)
    args = (x.astype(jnp.float32), basis, src, dst, inv_deg) + w_args

    vmem = pl.BlockSpec(memory_space=pltpu.MemorySpace.VMEM)
    in_specs = [vmem] * len(args)

    # Generation-aware VMEM limit (~85% of physical: ~109 MiB on v5e/v6e, ~54 MiB on v7x).
    try:
        vmem_cap = pltpu.get_tpu_info().vmem_capacity_bytes
    except Exception:
        vmem_cap = 64 * 1024 * 1024
    vmem_limit = min(int(vmem_cap * 0.85), 100 * 1024 * 1024)

    flops = (2 * E * N * (CIN + COUT_P)                  # one-hot gathers (x[src], h[src])
             + 2 * N * E * 3 * COUT_P                    # one-hot scatter-means
             + 2 * E * (CIN * K3P) * COUT_P              # conv1 fused spline matmul
             + 2 * E * (COUT * K3P) * COUT_P             # conv2 fused spline matmul
             + 2 * E * CIN * COUT_P                      # shortcut messages
             + 2 * N * CIN * 2 * COUT_P                  # fused root matmul X @ [r1|rs]
             + 2 * N * COUT * COUT_P)                    # conv2 root matmul
    bytes_accessed = int(sum(int(a.size) * a.dtype.itemsize for a in args)
                         + N * COUT_P * 4)

    out = pl.pallas_call(
        functools.partial(residual_block_kernel, bf16_mul),
        out_shape=jax.ShapeDtypeStruct((N, COUT_P), jnp.float32),
        in_specs=in_specs,
        out_specs=vmem,
        compiler_params=pltpu.CompilerParams(vmem_limit_bytes=vmem_limit),
        cost_estimate=pl.CostEstimate(flops=int(flops),
                                      transcendentals=int(2 * N * COUT_P),
                                      bytes_accessed=bytes_accessed),
    )(*args)
    return out[:, :COUT]    # drop channel padding (kernel store stays lane-dense)


def init_params(key, cin, cout):
    ks = jax.random.split(key, 9)
    u = lambda k, shape, s=0.1: jax.random.uniform(k, shape, jnp.float32, -s, s)
    ones = jnp.ones((1, cout), jnp.float32)
    zeros = jnp.zeros((1, cout), jnp.float32)
    return dict(
        w1=u(ks[0], (cin, K3, cout)), r1=u(ks[1], (cin, cout)), b1=u(ks[2], (1, cout)),
        g1=ones, be1=zeros,
        w2=u(ks[3], (cout, K3, cout)), r2=u(ks[4], (cout, cout)), b2=u(ks[5], (1, cout)),
        g2=ones, be2=zeros,
        ws=u(ks[6], (cin, cout)), rs=u(ks[7], (cin, cout)), bs=u(ks[8], (1, cout)),
        gs=ones, bes=zeros,
    )


if __name__ == "__main__":
    key = jax.random.PRNGKey(0)
    kx, ke, ka, kp = jax.random.split(key, 4)

    N, E, CIN, COUT = 16, 32, 4, 8
    x = jax.random.normal(kx, (N, CIN), jnp.float32)
    edge_index = jax.random.randint(ke, (2, E), 0, N)          # [2, E] (src; dst)
    edge_attr = jax.random.uniform(ka, (E, 3), jnp.float32)    # pseudo-coords in [0,1]^3
    params = init_params(kp, CIN, COUT)

    out = residual_block(x, edge_index, edge_attr, params)
    out = jax.block_until_ready(out)
    assert out.shape == (N, COUT)
    assert bool(jnp.all(jnp.isfinite(out)))
    print("KERNEL_OK")
</pallas_src>

<mosaic_0001>
module attributes {stable_mosaic.version = 11 : i64} {
  func.func @residual_block_kernel(%arg0: memref<16x4xf32, #tpu.memory_space<vmem>>, %arg1: memref<32x128xbf16, #tpu.memory_space<vmem>>, %arg2: memref<32x1xi32, #tpu.memory_space<vmem>>, %arg3: memref<1x32xi32, #tpu.memory_space<vmem>>, %arg4: memref<16x1xf32, #tpu.memory_space<vmem>>, %arg5: memref<512x128xbf16, #tpu.memory_space<vmem>>, %arg6: memref<4x256xbf16, #tpu.memory_space<vmem>>, %arg7: memref<1x128xf32, #tpu.memory_space<vmem>>, %arg8: memref<1x128xf32, #tpu.memory_space<vmem>>, %arg9: memref<1x128xf32, #tpu.memory_space<vmem>>, %arg10: memref<1024x128xbf16, #tpu.memory_space<vmem>>, %arg11: memref<8x128xbf16, #tpu.memory_space<vmem>>, %arg12: memref<1x128xf32, #tpu.memory_space<vmem>>, %arg13: memref<1x128xf32, #tpu.memory_space<vmem>>, %arg14: memref<1x128xf32, #tpu.memory_space<vmem>>, %arg15: memref<4x128xbf16, #tpu.memory_space<vmem>>, %arg16: memref<1x128xf32, #tpu.memory_space<vmem>>, %arg17: memref<1x128xf32, #tpu.memory_space<vmem>>, %arg18: memref<1x128xf32, #tpu.memory_space<vmem>>, %arg19: memref<16x128xf32, #tpu.memory_space<vmem>>) attributes {dimension_semantics = [], scalar_prefetch = 0 : i64, scratch_operands = 0 : i64, tpu.core_type = #tpu.core_type<tc>} {
    %c0 = arith.constant 0 : index
    %c0_0 = arith.constant 0 : index
    %0 = vector.load %arg0[%c0, %c0_0] : memref<16x4xf32, #tpu.memory_space<vmem>>, vector<16x4xf32>
    %c0_1 = arith.constant 0 : index
    %c0_2 = arith.constant 0 : index
    %1 = vector.load %arg1[%c0_1, %c0_2] : memref<32x128xbf16, #tpu.memory_space<vmem>>, vector<32x128xbf16>
    %c0_3 = arith.constant 0 : index
    %c0_4 = arith.constant 0 : index
    %2 = vector.load %arg4[%c0_3, %c0_4] : memref<16x1xf32, #tpu.memory_space<vmem>>, vector<16x1xf32>
    %3 = tpu.iota {dimensions = array<i32: 1>} : vector<32x16xi32>
    %c0_5 = arith.constant 0 : index
    %c0_6 = arith.constant 0 : index
    %4 = vector.load %arg2[%c0_5, %c0_6] : memref<32x1xi32, #tpu.memory_space<vmem>>, vector<32x1xi32>
    %5 = vector.broadcast %4 : vector<32x1xi32> to vector<32x16xi32>
    %6 = arith.cmpi eq, %3, %5 : vector<32x16xi32>
    %7 = arith.extui %6 : vector<32x16xi1> to vector<32x16xi32>
    %8 = arith.sitofp %7 : vector<32x16xi32> to vector<32x16xf32>
    %9 = tpu.iota {dimensions = array<i32: 0>} : vector<16x32xi32>
    %c0_7 = arith.constant 0 : index
    %c0_8 = arith.constant 0 : index
    %10 = vector.load %arg3[%c0_7, %c0_8] : memref<1x32xi32, #tpu.memory_space<vmem>>, vector<1x32xi32>
    %11 = vector.broadcast %10 : vector<1x32xi32> to vector<16x32xi32>
    %12 = arith.cmpi eq, %9, %11 : vector<16x32xi32>
    %13 = arith.extui %12 : vector<16x32xi1> to vector<16x32xi32>
    %14 = arith.sitofp %13 : vector<16x32xi32> to vector<16x32xf32>
    %cst = arith.constant dense<0.000000e+00> : vector<32x4xf32>
    %15 = tpu.matmul %8, %0, %cst {dimension_numbers = #tpu.dot_dimension_numbers<[1], [0], [0], [1], [0, 0, 1, 1], [], []>} : vector<32x16xf32>, vector<16x4xf32>, vector<32x4xf32> -> vector<32x4xf32>
    %16 = arith.truncf %15 : vector<32x4xf32> to vector<32x4xbf16>
    %17 = arith.truncf %0 : vector<16x4xf32> to vector<16x4xbf16>
    %c0_9 = arith.constant 0 : index
    %c0_10 = arith.constant 0 : index
    %18 = vector.load %arg6[%c0_9, %c0_10] : memref<4x256xbf16, #tpu.memory_space<vmem>>, vector<4x256xbf16>
    %cst_11 = arith.constant dense<0.000000e+00> : vector<16x256xf32>
    %19 = tpu.matmul %17, %18, %cst_11 {dimension_numbers = #tpu.dot_dimension_numbers<[1], [0], [0], [1], [0, 0, 1, 1], [], []>} : vector<16x4xbf16>, vector<4x256xbf16>, vector<16x256xf32> -> vector<16x256xf32>
    %20 = vector.extract_strided_slice %19 {offsets = [0, 0], sizes = [16, 128], strides = [1, 1]} : vector<16x256xf32> to vector<16x128xf32>
    %21 = vector.extract_strided_slice %19 {offsets = [0, 128], sizes = [16, 128], strides = [1, 1]} : vector<16x256xf32> to vector<16x128xf32>
    %22 = vector.extract_strided_slice %16 {offsets = [0, 0], sizes = [32, 1], strides = [1, 1]} : vector<32x4xbf16> to vector<32x1xbf16>
    %23 = vector.broadcast %22 : vector<32x1xbf16> to vector<32x128xbf16>
    %24 = arith.mulf %23, %1 : vector<32x128xbf16>
    %25 = vector.extract_strided_slice %16 {offsets = [0, 1], sizes = [32, 1], strides = [1, 1]} : vector<32x4xbf16> to vector<32x1xbf16>
    %26 = vector.broadcast %25 : vector<32x1xbf16> to vector<32x128xbf16>
    %27 = arith.mulf %26, %1 : vector<32x128xbf16>
    %28 = vector.extract_strided_slice %16 {offsets = [0, 2], sizes = [32, 1], strides = [1, 1]} : vector<32x4xbf16> to vector<32x1xbf16>
    %29 = vector.broadcast %28 : vector<32x1xbf16> to vector<32x128xbf16>
    %30 = arith.mulf %29, %1 : vector<32x128xbf16>
    %31 = vector.extract_strided_slice %16 {offsets = [0, 3], sizes = [32, 1], strides = [1, 1]} : vector<32x4xbf16> to vector<32x1xbf16>
    %32 = vector.broadcast %31 : vector<32x1xbf16> to vector<32x128xbf16>
    %33 = arith.mulf %32, %1 : vector<32x128xbf16>
    %34 = tpu.concatenate %24, %27, %30, %33 in 1 : vector<32x128xbf16>, vector<32x128xbf16>, vector<32x128xbf16>, vector<32x128xbf16> -> vector<32x512xbf16>
    %c0_12 = arith.constant 0 : index
    %c0_13 = arith.constant 0 : index
    %35 = vector.load %arg5[%c0_12, %c0_13] : memref<512x128xbf16, #tpu.memory_space<vmem>>, vector<512x128xbf16>
    %cst_14 = arith.constant dense<0.000000e+00> : vector<32x128xf32>
    %36 = tpu.matmul %34, %35, %cst_14 {dimension_numbers = #tpu.dot_dimension_numbers<[1], [0], [0], [1], [0, 0, 1, 1], [], []>} : vector<32x512xbf16>, vector<512x128xbf16>, vector<32x128xf32> -> vector<32x128xf32>
    %c0_15 = arith.constant 0 : index
    %c0_16 = arith.constant 0 : index
    %37 = vector.load %arg15[%c0_15, %c0_16] : memref<4x128xbf16, #tpu.memory_space<vmem>>, vector<4x128xbf16>
    %cst_17 = arith.constant dense<0.000000e+00> : vector<32x128xf32>
    %38 = tpu.matmul %16, %37, %cst_17 {dimension_numbers = #tpu.dot_dimension_numbers<[1], [0], [0], [1], [0, 0, 1, 1], [], []>} : vector<32x4xbf16>, vector<4x128xbf16>, vector<32x128xf32> -> vector<32x128xf32>
    %39 = tpu.concatenate %36, %38 in 1 : vector<32x128xf32>, vector<32x128xf32> -> vector<32x256xf32>
    %cst_18 = arith.constant dense<0.000000e+00> : vector<16x256xf32>
    %40 = tpu.matmul %14, %39, %cst_18 {dimension_numbers = #tpu.dot_dimension_numbers<[1], [0], [0], [1], [0, 0, 1, 1], [], []>} : vector<16x32xf32>, vector<32x256xf32>, vector<16x256xf32> -> vector<16x256xf32>
    %41 = vector.broadcast %2 : vector<16x1xf32> to vector<16x256xf32>
    %42 = arith.mulf %40, %41 : vector<16x256xf32>
    %43 = vector.extract_strided_slice %42 {offsets = [0, 0], sizes = [16, 128], strides = [1, 1]} : vector<16x256xf32> to vector<16x128xf32>
    %44 = vector.extract_strided_slice %42 {offsets = [0, 128], sizes = [16, 128], strides = [1, 1]} : vector<16x256xf32> to vector<16x128xf32>
    %45 = arith.addf %43, %20 : vector<16x128xf32>
    %c0_19 = arith.constant 0 : index
    %c0_20 = arith.constant 0 : index
    %46 = vector.load %arg7[%c0_19, %c0_20] : memref<1x128xf32, #tpu.memory_space<vmem>>, vector<1x128xf32>
    %47 = vector.broadcast %46 : vector<1x128xf32> to vector<16x128xf32>
    %48 = arith.addf %45, %47 : vector<16x128xf32>
    %c0_21 = arith.constant 0 : index
    %c0_22 = arith.constant 0 : index
    %49 = vector.load %arg8[%c0_21, %c0_22] : memref<1x128xf32, #tpu.memory_space<vmem>>, vector<1x128xf32>
    %c0_23 = arith.constant 0 : index
    %c0_24 = arith.constant 0 : index
    %50 = vector.load %arg9[%c0_23, %c0_24] : memref<1x128xf32, #tpu.memory_space<vmem>>, vector<1x128xf32>
    %cst_25 = arith.constant dense<0.000000e+00> : vector<128xf32>
    %51 = vector.multi_reduction <add>, %48, %cst_25 [0] : vector<16x128xf32> to vector<128xf32>
    %52 = vector.shape_cast %51 : vector<128xf32> to vector<1x128xf32>
    %cst_26 = arith.constant 1.600000e+01 : f32
    %53 = vector.broadcast %cst_26 : f32 to vector<1x128xf32>
    %54 = arith.divf %52, %53 : vector<1x128xf32>
    %55 = vector.broadcast %54 : vector<1x128xf32> to vector<16x128xf32>
    %56 = arith.subf %48, %55 : vector<16x128xf32>
    %57 = arith.mulf %56, %56 : vector<16x128xf32>
    %cst_27 = arith.constant dense<0.000000e+00> : vector<128xf32>
    %58 = vector.multi_reduction <add>, %57, %cst_27 [0] : vector<16x128xf32> to vector<128xf32>
    %59 = vector.shape_cast %58 : vector<128xf32> to vector<1x128xf32>
    %cst_28 = arith.constant 1.600000e+01 : f32
    %60 = vector.broadcast %cst_28 : f32 to vector<1x128xf32>
    %61 = arith.divf %59, %60 : vector<1x128xf32>
    %62 = vector.broadcast %54 : vector<1x128xf32> to vector<16x128xf32>
    %63 = arith.subf %48, %62 : vector<16x128xf32>
    %cst_29 = arith.constant 9.99999974E-6 : f32
    %64 = vector.broadcast %cst_29 : f32 to vector<1x128xf32>
    %65 = arith.addf %61, %64 : vector<1x128xf32>
    %66 = math.rsqrt %65 : vector<1x128xf32>
    %67 = vector.broadcast %66 : vector<1x128xf32> to vector<16x128xf32>
    %68 = arith.mulf %63, %67 : vector<16x128xf32>
    %69 = vector.broadcast %49 : vector<1x128xf32> to vector<16x128xf32>
    %70 = arith.mulf %68, %69 : vector<16x128xf32>
    %71 = vector.broadcast %50 : vector<1x128xf32> to vector<16x128xf32>
    %72 = arith.addf %70, %71 : vector<16x128xf32>
    %cst_30 = arith.constant 0.000000e+00 : f32
    %73 = vector.broadcast %cst_30 : f32 to vector<16x128xf32>
    %74 = arith.cmpf ogt, %72, %73 : vector<16x128xf32>
    %cst_31 = arith.constant 0.000000e+00 : f32
    %75 = vector.broadcast %cst_31 : f32 to vector<16x128xf32>
    %76 = arith.minimumf %72, %75 : vector<16x128xf32>
    %77 = math.exp %76 : vector<16x128xf32>
    %cst_32 = arith.constant 1.000000e+00 : f32
    %78 = vector.broadcast %cst_32 : f32 to vector<16x128xf32>
    %79 = arith.subf %77, %78 : vector<16x128xf32>
    %80 = arith.select %74, %72, %79 : vector<16x128xi1>, vector<16x128xf32>
    %81 = arith.addf %44, %21 : vector<16x128xf32>
    %c0_33 = arith.constant 0 : index
    %c0_34 = arith.constant 0 : index
    %82 = vector.load %arg16[%c0_33, %c0_34] : memref<1x128xf32, #tpu.memory_space<vmem>>, vector<1x128xf32>
    %83 = vector.broadcast %82 : vector<1x128xf32> to vector<16x128xf32>
    %84 = arith.addf %81, %83 : vector<16x128xf32>
    %c0_35 = arith.constant 0 : index
    %c0_36 = arith.constant 0 : index
    %85 = vector.load %arg17[%c0_35, %c0_36] : memref<1x128xf32, #tpu.memory_space<vmem>>, vector<1x128xf32>
    %c0_37 = arith.constant 0 : index
    %c0_38 = arith.constant 0 : index
    %86 = vector.load %arg18[%c0_37, %c0_38] : memref<1x128xf32, #tpu.memory_space<vmem>>, vector<1x128xf32>
    %cst_39 = arith.constant dense<0.000000e+00> : vector<128xf32>
    %87 = vector.multi_reduction <add>, %84, %cst_39 [0] : vector<16x128xf32> to vector<128xf32>
    %88 = vector.shape_cast %87 : vector<128xf32> to vector<1x128xf32>
    %cst_40 = arith.constant 1.600000e+01 : f32
    %89 = vector.broadcast %cst_40 : f32 to vector<1x128xf32>
    %90 = arith.divf %88, %89 : vector<1x128xf32>
    %91 = vector.broadcast %90 : vector<1x128xf32> to vector<16x128xf32>
    %92 = arith.subf %84, %91 : vector<16x128xf32>
    %93 = arith.mulf %92, %92 : vector<16x128xf32>
    %cst_41 = arith.constant dense<0.000000e+00> : vector<128xf32>
    %94 = vector.multi_reduction <add>, %93, %cst_41 [0] : vector<16x128xf32> to vector<128xf32>
    %95 = vector.shape_cast %94 : vector<128xf32> to vector<1x128xf32>
    %cst_42 = arith.constant 1.600000e+01 : f32
    %96 = vector.broadcast %cst_42 : f32 to vector<1x128xf32>
    %97 = arith.divf %95, %96 : vector<1x128xf32>
    %98 = vector.broadcast %90 : vector<1x128xf32> to vector<16x128xf32>
    %99 = arith.subf %84, %98 : vector<16x128xf32>
    %cst_43 = arith.constant 9.99999974E-6 : f32
    %100 = vector.broadcast %cst_43 : f32 to vector<1x128xf32>
    %101 = arith.addf %97, %100 : vector<1x128xf32>
    %102 = math.rsqrt %101 : vector<1x128xf32>
    %103 = vector.broadcast %102 : vector<1x128xf32> to vector<16x128xf32>
    %104 = arith.mulf %99, %103 : vector<16x128xf32>
    %105 = vector.broadcast %85 : vector<1x128xf32> to vector<16x128xf32>
    %106 = arith.mulf %104, %105 : vector<16x128xf32>
    %107 = vector.broadcast %86 : vector<1x128xf32> to vector<16x128xf32>
    %108 = arith.addf %106, %107 : vector<16x128xf32>
    %cst_44 = arith.constant dense<0.000000e+00> : vector<32x128xf32>
    %109 = tpu.matmul %8, %80, %cst_44 {dimension_numbers = #tpu.dot_dimension_numbers<[1], [0], [0], [1], [0, 0, 1, 1], [], []>} : vector<32x16xf32>, vector<16x128xf32>, vector<32x128xf32> -> vector<32x128xf32>
    %110 = vector.extract_strided_slice %109 {offsets = [0, 0], sizes = [32, 8], strides = [1, 1]} : vector<32x128xf32> to vector<32x8xf32>
    %111 = arith.truncf %110 : vector<32x8xf32> to vector<32x8xbf16>
    %112 = vector.extract_strided_slice %111 {offsets = [0, 0], sizes = [32, 1], strides = [1, 1]} : vector<32x8xbf16> to vector<32x1xbf16>
    %113 = vector.broadcast %112 : vector<32x1xbf16> to vector<32x128xbf16>
    %114 = arith.mulf %113, %1 : vector<32x128xbf16>
    %115 = vector.extract_strided_slice %111 {offsets = [0, 1], sizes = [32, 1], strides = [1, 1]} : vector<32x8xbf16> to vector<32x1xbf16>
    %116 = vector.broadcast %115 : vector<32x1xbf16> to vector<32x128xbf16>
    %117 = arith.mulf %116, %1 : vector<32x128xbf16>
    %118 = vector.extract_strided_slice %111 {offsets = [0, 2], sizes = [32, 1], strides = [1, 1]} : vector<32x8xbf16> to vector<32x1xbf16>
    %119 = vector.broadcast %118 : vector<32x1xbf16> to vector<32x128xbf16>
    %120 = arith.mulf %119, %1 : vector<32x128xbf16>
    %121 = vector.extract_strided_slice %111 {offsets = [0, 3], sizes = [32, 1], strides = [1, 1]} : vector<32x8xbf16> to vector<32x1xbf16>
    %122 = vector.broadcast %121 : vector<32x1xbf16> to vector<32x128xbf16>
    %123 = arith.mulf %122, %1 : vector<32x128xbf16>
    %124 = vector.extract_strided_slice %111 {offsets = [0, 4], sizes = [32, 1], strides = [1, 1]} : vector<32x8xbf16> to vector<32x1xbf16>
    %125 = vector.broadcast %124 : vector<32x1xbf16> to vector<32x128xbf16>
    %126 = arith.mulf %125, %1 : vector<32x128xbf16>
    %127 = vector.extract_strided_slice %111 {offsets = [0, 5], sizes = [32, 1], strides = [1, 1]} : vector<32x8xbf16> to vector<32x1xbf16>
    %128 = vector.broadcast %127 : vector<32x1xbf16> to vector<32x128xbf16>
    %129 = arith.mulf %128, %1 : vector<32x128xbf16>
    %130 = vector.extract_strided_slice %111 {offsets = [0, 6], sizes = [32, 1], strides = [1, 1]} : vector<32x8xbf16> to vector<32x1xbf16>
    %131 = vector.broadcast %130 : vector<32x1xbf16> to vector<32x128xbf16>
    %132 = arith.mulf %131, %1 : vector<32x128xbf16>
    %133 = vector.extract_strided_slice %111 {offsets = [0, 7], sizes = [32, 1], strides = [1, 1]} : vector<32x8xbf16> to vector<32x1xbf16>
    %134 = vector.broadcast %133 : vector<32x1xbf16> to vector<32x128xbf16>
    %135 = arith.mulf %134, %1 : vector<32x128xbf16>
    %136 = tpu.concatenate %114, %117, %120, %123, %126, %129, %132, %135 in 1 : vector<32x128xbf16>, vector<32x128xbf16>, vector<32x128xbf16>, vector<32x128xbf16>, vector<32x128xbf16>, vector<32x128xbf16>, vector<32x128xbf16>, vector<32x128xbf16> -> vector<32x1024xbf16>
    %c0_45 = arith.constant 0 : index
    %c0_46 = arith.constant 0 : index
    %137 = vector.load %arg10[%c0_45, %c0_46] : memref<1024x128xbf16, #tpu.memory_space<vmem>>, vector<1024x128xbf16>
    %cst_47 = arith.constant dense<0.000000e+00> : vector<32x128xf32>
    %138 = tpu.matmul %136, %137, %cst_47 {dimension_numbers = #tpu.dot_dimension_numbers<[1], [0], [0], [1], [0, 0, 1, 1], [], []>} : vector<32x1024xbf16>, vector<1024x128xbf16>, vector<32x128xf32> -> vector<32x128xf32>
    %cst_48 = arith.constant dense<0.000000e+00> : vector<16x128xf32>
    %139 = tpu.matmul %14, %138, %cst_48 {dimension_numbers = #tpu.dot_dimension_numbers<[1], [0], [0], [1], [0, 0, 1, 1], [], []>} : vector<16x32xf32>, vector<32x128xf32>, vector<16x128xf32> -> vector<16x128xf32>
    %140 = vector.broadcast %2 : vector<16x1xf32> to vector<16x128xf32>
    %141 = arith.mulf %139, %140 : vector<16x128xf32>
    %142 = vector.extract_strided_slice %80 {offsets = [0, 0], sizes = [16, 8], strides = [1, 1]} : vector<16x128xf32> to vector<16x8xf32>
    %143 = arith.truncf %142 : vector<16x8xf32> to vector<16x8xbf16>
    %c0_49 = arith.constant 0 : index
    %c0_50 = arith.constant 0 : index
    %144 = vector.load %arg11[%c0_49, %c0_50] : memref<8x128xbf16, #tpu.memory_space<vmem>>, vector<8x128xbf16>
    %cst_51 = arith.constant dense<0.000000e+00> : vector<16x128xf32>
    %145 = tpu.matmul %143, %144, %cst_51 {dimension_numbers = #tpu.dot_dimension_numbers<[1], [0], [0], [1], [0, 0, 1, 1], [], []>} : vector<16x8xbf16>, vector<8x128xbf16>, vector<16x128xf32> -> vector<16x128xf32>
    %146 = arith.addf %141, %145 : vector<16x128xf32>
    %c0_52 = arith.constant 0 : index
    %c0_53 = arith.constant 0 : index
    %147 = vector.load %arg12[%c0_52, %c0_53] : memref<1x128xf32, #tpu.memory_space<vmem>>, vector<1x128xf32>
    %148 = vector.broadcast %147 : vector<1x128xf32> to vector<16x128xf32>
    %149 = arith.addf %146, %148 : vector<16x128xf32>
    %c0_54 = arith.constant 0 : index
    %c0_55 = arith.constant 0 : index
    %150 = vector.load %arg13[%c0_54, %c0_55] : memref<1x128xf32, #tpu.memory_space<vmem>>, vector<1x128xf32>
    %c0_56 = arith.constant 0 : index
    %c0_57 = arith.constant 0 : index
    %151 = vector.load %arg14[%c0_56, %c0_57] : memref<1x128xf32, #tpu.memory_space<vmem>>, vector<1x128xf32>
    %cst_58 = arith.constant dense<0.000000e+00> : vector<128xf32>
    %152 = vector.multi_reduction <add>, %149, %cst_58 [0] : vector<16x128xf32> to vector<128xf32>
    %153 = vector.shape_cast %152 : vector<128xf32> to vector<1x128xf32>
    %cst_59 = arith.constant 1.600000e+01 : f32
    %154 = vector.broadcast %cst_59 : f32 to vector<1x128xf32>
    %155 = arith.divf %153, %154 : vector<1x128xf32>
    %156 = vector.broadcast %155 : vector<1x128xf32> to vector<16x128xf32>
    %157 = arith.subf %149, %156 : vector<16x128xf32>
    %158 = arith.mulf %157, %157 : vector<16x128xf32>
    %cst_60 = arith.constant dense<0.000000e+00> : vector<128xf32>
    %159 = vector.multi_reduction <add>, %158, %cst_60 [0] : vector<16x128xf32> to vector<128xf32>
    %160 = vector.shape_cast %159 : vector<128xf32> to vector<1x128xf32>
    %cst_61 = arith.constant 1.600000e+01 : f32
    %161 = vector.broadcast %cst_61 : f32 to vector<1x128xf32>
    %162 = arith.divf %160, %161 : vector<1x128xf32>
    %163 = vector.broadcast %155 : vector<1x128xf32> to vector<16x128xf32>
    %164 = arith.subf %149, %163 : vector<16x128xf32>
    %cst_62 = arith.constant 9.99999974E-6 : f32
    %165 = vector.broadcast %cst_62 : f32 to vector<1x128xf32>
    %166 = arith.addf %162, %165 : vector<1x128xf32>
    %167 = math.rsqrt %166 : vector<1x128xf32>
    %168 = vector.broadcast %167 : vector<1x128xf32> to vector<16x128xf32>
    %169 = arith.mulf %164, %168 : vector<16x128xf32>
    %170 = vector.broadcast %150 : vector<1x128xf32> to vector<16x128xf32>
    %171 = arith.mulf %169, %170 : vector<16x128xf32>
    %172 = vector.broadcast %151 : vector<1x128xf32> to vector<16x128xf32>
    %173 = arith.addf %171, %172 : vector<16x128xf32>
    %174 = arith.addf %173, %108 : vector<16x128xf32>
    %cst_63 = arith.constant 0.000000e+00 : f32
    %175 = vector.broadcast %cst_63 : f32 to vector<16x128xf32>
    %176 = arith.cmpf ogt, %174, %175 : vector<16x128xf32>
    %cst_64 = arith.constant 0.000000e+00 : f32
    %177 = vector.broadcast %cst_64 : f32 to vector<16x128xf32>
    %178 = arith.minimumf %174, %177 : vector<16x128xf32>
    %179 = math.exp %178 : vector<16x128xf32>
    %cst_65 = arith.constant 1.000000e+00 : f32
    %180 = vector.broadcast %cst_65 : f32 to vector<16x128xf32>
    %181 = arith.subf %179, %180 : vector<16x128xf32>
    %182 = arith.select %176, %174, %181 : vector<16x128xi1>, vector<16x128xf32>
    %c0_66 = arith.constant 0 : index
    %c0_67 = arith.constant 0 : index
    %183 = vector.load %arg19[%c0_66, %c0_67] : memref<16x128xf32, #tpu.memory_space<vmem>>, vector<16x128xf32>
    tpu.vector_store %arg19[%c0_66, %c0_67], %182 {strides = array<i32>} : memref<16x128xf32, #tpu.memory_space<vmem>>, vector<16x128xf32>,
    return
  }
}

</mosaic_0001>

<llo_original>
// kernel: tpu_custom_call.1
$region0: #{tpu_custom_call.1}
  #allocation0 [shape = 'u32[]', space=smem, size = 0x4, offset = 0x4, fixed_abs, tag = 'smem constant byte address 0x4 - core index']
  #allocation1 [shape = 'u32[144,128]{1,0:T(1,128)}', space=vmem, size = 0x12000, scoped, tag = 'internal scratch']
  %s0 = inlined_call_operand.vmem [shape: f32[16,4], index: 0, kind: input, shape index: {}]
  %s1 = inlined_call_operand.vmem [shape: bf16[32,128], index: 1, kind: input, shape index: {}]
  %s2 = inlined_call_operand.vmem [shape: s32[32,1], index: 2, kind: input, shape index: {}]
  %s3 = inlined_call_operand.vmem [shape: s32[1,32], index: 3, kind: input, shape index: {}]
  %s4 = inlined_call_operand.vmem [shape: f32[16,1], index: 4, kind: input, shape index: {}]
  %s5 = inlined_call_operand.hbm [shape: bf16[512,128], index: 5, kind: input, shape index: {}]
  %s6 = inlined_call_operand.vmem [shape: bf16[4,256], index: 6, kind: input, shape index: {}]
  %s7 = inlined_call_operand.vmem [shape: f32[1,128], index: 7, kind: input, shape index: {}]
  %s8 = inlined_call_operand.vmem [shape: f32[1,128], index: 8, kind: input, shape index: {}]
  %s9 = inlined_call_operand.vmem [shape: f32[1,128], index: 9, kind: input, shape index: {}]
  %s10 = inlined_call_operand.hbm [shape: bf16[1024,128], index: 10, kind: input, shape index: {}]
  %s11 = inlined_call_operand.vmem [shape: bf16[8,128], index: 11, kind: input, shape index: {}]
  %s12 = inlined_call_operand.vmem [shape: f32[1,128], index: 12, kind: input, shape index: {}]
  %s13 = inlined_call_operand.vmem [shape: f32[1,128], index: 13, kind: input, shape index: {}]
  %s14 = inlined_call_operand.vmem [shape: f32[1,128], index: 14, kind: input, shape index: {}]
  %s15 = inlined_call_operand.vmem [shape: bf16[4,128], index: 15, kind: input, shape index: {}]
  %s16 = inlined_call_operand.vmem [shape: f32[1,128], index: 16, kind: input, shape index: {}]
  %s17 = inlined_call_operand.vmem [shape: f32[1,128], index: 17, kind: input, shape index: {}]
  %s18 = inlined_call_operand.vmem [shape: f32[1,128], index: 18, kind: input, shape index: {}]
  %s19 = inlined_call_operand.hbm [shape: f32[16,128], index: 19, kind: output, shape index: {}]
  %s20 = sld [smem:[#allocation0]]
  $region94: #{tpu_custom_call.1} parent=0
    _
  %s22 = ssub.s32 1, %s20
  %s23 = scalar_select 0, %s22, %s20
  $region1: #{tpu_custom_call.1} parent=0
    #allocation2 [shape = 'u8[131072]{0}', space=vmem, size = 0x20000, scoped, tag = 'input window, operand 5, single buffered']
    #allocation3 [shape = 's32[1]{0}', space=sflag, size = 0x4, scoped, tag = 'scoped memory for tpu_custom_call.1']
    #allocation4 [shape = 's32[1]{0}', space=sflag, size = 0x4, scoped, tag = 'scoped memory for tpu_custom_call.1']
    #allocation5 [shape = 'u8[262144]{0}', space=vmem, size = 0x40000, scoped, tag = 'input window, operand 10, single buffered']
    #allocation6 [shape = 's32[1]{0}', space=sflag, size = 0x4, scoped, tag = 'scoped memory for tpu_custom_call.1']
    #allocation7 [shape = 'u8[8192]{0}', space=vmem, size = 0x2000, scoped, tag = 'output window, operand 0, single buffered']
    %24 = vsyncpa [#allocation3], 0
    %25 = vsyncpa [#allocation6], 0
    %26 = vsyncpa [#allocation4], 0
    // Predicated region
    $region2: #{tpu_custom_call.1} parent=1 // pred_check
      _
    $region3: #{tpu_custom_call.1} parent=1 // pred_check_branch
      %28 = sbr.rel (0) target = $region5
    $region4: #{tpu_custom_call.1} parent=1 // pred_region
      _
    $region5: #{tpu_custom_call.1} parent=1 // pred_fallthru
      _
    // Predicated region
    $region6: #{tpu_custom_call.1} parent=1 // pred_check
      _
    $region7: #{tpu_custom_call.1} parent=1 // pred_check_branch
      %30 = sbr.rel (0) target = $region9
    $region8: #{tpu_custom_call.1} parent=1 // pred_region
      _
    $region9: #{tpu_custom_call.1} parent=1 // pred_fallthru
      _
    // Predicated region
    $region10: #{tpu_custom_call.1} parent=1 // pred_check
      _
    $region11: #{tpu_custom_call.1} parent=1 // pred_check_branch
      %32 = sbr.rel (0) target = $region13
    $region12: #{tpu_custom_call.1} parent=1 // pred_region
      _
    $region13: #{tpu_custom_call.1} parent=1 // pred_fallthru
      _
    // Predicated region
    $region14: #{tpu_custom_call.1} parent=1 // pred_check
      _
    $region15: #{tpu_custom_call.1} parent=1 // pred_check_branch
      %34 = sbr.rel (0) target = $region17
    $region16: #{tpu_custom_call.1} parent=1 // pred_region
      _
    $region17: #{tpu_custom_call.1} parent=1 // pred_fallthru
      _
    // Predicated region
    $region18: #{tpu_custom_call.1} parent=1 // pred_check
      _
    $region19: #{tpu_custom_call.1} parent=1 // pred_check_branch
      %36 = sbr.rel (0) target = $region21
    $region20: #{tpu_custom_call.1} parent=1 // pred_region
      _
    $region21: #{tpu_custom_call.1} parent=1 // pred_fallthru
      _
    // Predicated region
    $region22: #{tpu_custom_call.1} parent=1 // pred_check
      _
    $region23: #{tpu_custom_call.1} parent=1 // pred_check_branch
      %38 = sbr.rel (0) target = $region25
    $region24: #{tpu_custom_call.1} parent=1 // pred_region
      %s40 = ssub.s32 4096, 4096
      %41 = vsyncadd [#allocation3], %s40
      %s42 = sshll.u32 [#allocation2], 4
      %s43 = int_to_ptr.vmem [resolvable:$true] %s42
      %48 = dma.hbm_to_vmem [thread:$0]  %s5, 4096, %s43, [#allocation3], 64, 64, 4
    $region25: #{tpu_custom_call.1} parent=1 // pred_fallthru
      _
    // Predicated region
    $region26: #{tpu_custom_call.1} parent=1 // pred_check
      _
    $region27: #{tpu_custom_call.1} parent=1 // pred_check_branch
      %50 = sbr.rel (0) target = $region29
    $region28: #{tpu_custom_call.1} parent=1 // pred_region
      _
    $region29: #{tpu_custom_call.1} parent=1 // pred_fallthru
      _
    // Predicated region
    $region30: #{tpu_custom_call.1} parent=1 // pred_check
      _
    $region31: #{tpu_custom_call.1} parent=1 // pred_check_branch
      %52 = sbr.rel (0) target = $region33
    $region32: #{tpu_custom_call.1} parent=1 // pred_region
      _
    $region33: #{tpu_custom_call.1} parent=1 // pred_fallthru
      _
    // Predicated region
    $region34: #{tpu_custom_call.1} parent=1 // pred_check
      _
    $region35: #{tpu_custom_call.1} parent=1 // pred_check_branch
      %54 = sbr.rel (0) target = $region37
    $region36: #{tpu_custom_call.1} parent=1 // pred_region
      _
    $region37: #{tpu_custom_call.1} parent=1 // pred_fallthru
      _
    // Predicated region
    $region38: #{tpu_custom_call.1} parent=1 // pred_check
      _
    $region39: #{tpu_custom_call.1} parent=1 // pred_check_branch
      %56 = sbr.rel (0) target = $region41
    $region40: #{tpu_custom_call.1} parent=1 // pred_region
      _
    $region41: #{tpu_custom_call.1} parent=1 // pred_fallthru
      _
    // Predicated region
    $region42: #{tpu_custom_call.1} parent=1 // pred_check
      _
    $region43: #{tpu_custom_call.1} parent=1 // pred_check_branch
      %58 = sbr.rel (0) target = $region45
    $region44: #{tpu_custom_call.1} parent=1 // pred_region
      %s60 = ssub.s32 8192, 8192
      %61 = vsyncadd [#allocation6], %s60
      %s62 = sshll.u32 [#allocation5], 4
      %s63 = int_to_ptr.vmem [resolvable:$true] %s62
      %68 = dma.hbm_to_vmem [thread:$0]  %s10, 8192, %s63, [#allocation6], 64, 64, 4
    $region45: #{tpu_custom_call.1} parent=1 // pred_fallthru
      _
    // Predicated region
    $region46: #{tpu_custom_call.1} parent=1 // pred_check
      _
    $region47: #{tpu_custom_call.1} parent=1 // pred_check_branch
      %70 = sbr.rel (0) target = $region49
    $region48: #{tpu_custom_call.1} parent=1 // pred_region
      _
    $region49: #{tpu_custom_call.1} parent=1 // pred_fallthru
      _
    // Predicated region
    $region50: #{tpu_custom_call.1} parent=1 // pred_check
      _
    $region51: #{tpu_custom_call.1} parent=1 // pred_check_branch
      %72 = sbr.rel (0) target = $region53
    $region52: #{tpu_custom_call.1} parent=1 // pred_region
      _
    $region53: #{tpu_custom_call.1} parent=1 // pred_fallthru
      _
    // Predicated region
    $region54: #{tpu_custom_call.1} parent=1 // pred_check
      _
    $region55: #{tpu_custom_call.1} parent=1 // pred_check_branch
      %74 = sbr.rel (0) target = $region57
    $region56: #{tpu_custom_call.1} parent=1 // pred_region
      _
    $region57: #{tpu_custom_call.1} parent=1 // pred_fallthru
      _
    // Predicated region
    $region58: #{tpu_custom_call.1} parent=1 // pred_check
      _
    $region59: #{tpu_custom_call.1} parent=1 // pred_check_branch
      %76 = sbr.rel (0) target = $region61
    $region60: #{tpu_custom_call.1} parent=1 // pred_region
      _
    $region61: #{tpu_custom_call.1} parent=1 // pred_fallthru
      _
    // Predicated region
    $region62: #{tpu_custom_call.1} parent=1 // pred_check
      _
    $region63: #{tpu_custom_call.1} parent=1 // pred_check_branch
      %78 = sbr.rel (0) target = $region65
    $region64: #{tpu_custom_call.1} parent=1 // pred_region
      _
    $region65: #{tpu_custom_call.1} parent=1 // pred_fallthru
      _
    // Predicated region
    $region66: #{tpu_custom_call.1} parent=1 // pred_check
      _
    $region67: #{tpu_custom_call.1} parent=1 // pred_check_branch
      %80 = sbr.rel (0) target = $region69
    $region68: #{tpu_custom_call.1} parent=1 // pred_region
      _
    $region69: #{tpu_custom_call.1} parent=1 // pred_fallthru
      _
    // Predicated region
    $region70: #{tpu_custom_call.1} parent=1 // pred_check
      _
    $region71: #{tpu_custom_call.1} parent=1 // pred_check_branch
      %82 = sbr.rel (0) target = $region73
    $region72: #{tpu_custom_call.1} parent=1 // pred_region
      _
    $region73: #{tpu_custom_call.1} parent=1 // pred_fallthru
      _
    // Predicated region
    $region74: #{tpu_custom_call.1} parent=1 // pred_check
      _
    $region75: #{tpu_custom_call.1} parent=1 // pred_check_branch
      %84 = sbr.rel (0) target = $region77
    $region76: #{tpu_custom_call.1} parent=1 // pred_region
      _
    $region77: #{tpu_custom_call.1} parent=1 // pred_fallthru
      _
    // Predicated region
    $region78: #{tpu_custom_call.1} parent=1 // pred_check
      _
    $region79: #{tpu_custom_call.1} parent=1 // pred_check_branch
      %86 = sbr.rel (0) target = $region81
    $region80: #{tpu_custom_call.1} parent=1 // pred_region
      %87 = dma.done [#allocation3], 4096
    $region81: #{tpu_custom_call.1} parent=1 // pred_fallthru
      _
    // Predicated region
    $region82: #{tpu_custom_call.1} parent=1 // pred_check
      _
    $region83: #{tpu_custom_call.1} parent=1 // pred_check_branch
      %89 = sbr.rel (0) target = $region85
    $region84: #{tpu_custom_call.1} parent=1 // pred_region
      %90 = dma.done [#allocation6], 8192
    $region85: #{tpu_custom_call.1} parent=1 // pred_fallthru
      _
    %v92 = vld [vmem:[%s0] sm:$0xff]
    %v93 = vld [vmem:[%s0 + $0x8] sm:$0xff]
    %v94 = vld [vmem:[%s1] sm:$0xf]
    %v95 = vld [vmem:[%s1 + $0x4] sm:$0xf]
    %v96 = vld [vmem:[%s1 + $0x8] sm:$0xf]
    %v97 = vld [vmem:[%s1 + $0xc] sm:$0xf]
    %v98 = vld [vmem:[%s4] sm:$0xff]
    %v99 = vld [vmem:[%s4 + $0x8] sm:$0xff]
    %v100 = vlaneseq
    %v101 = vand.u32 %v100, 127
    %v102 = vld [vmem:[%s2] sm:$0xff]
    %v103 = vld [vmem:[%s2 + $0x8] sm:$0xff]
    %v104 = vld [vmem:[%s2 + $0x10] sm:$0xff]
    %v105 = vld [vmem:[%s2 + $0x18] sm:$0xff]
    %106 = vset.pattern.permute.xlu0 0
    %107 = vperm.xlu0 %106, %v102
    %v108 = vpop.permute.xlu0 %107
    %109 = vset.pattern.permute.xlu0 0
    %110 = vperm.xlu0 %109, %v103
    %v111 = vpop.permute.xlu0 %110
    %112 = vset.pattern.permute.xlu0 0
    %113 = vperm.xlu0 %112, %v104
    %v114 = vpop.permute.xlu0 %113
    %115 = vset.pattern.permute.xlu0 0
    %116 = vperm.xlu0 %115, %v105
    %v117 = vpop.permute.xlu0 %116
    %vm118 = vcmp.eq.s32.totalorder %v101, %v108
    %vm119 = vcmp.eq.s32.totalorder %v101, %v111
    %vm120 = vcmp.eq.s32.totalorder %v101, %v114
    %vm121 = vcmp.eq.s32.totalorder %v101, %v117
    %v122 = vsel %vm118, 1, 0
    %v123 = vsel %vm119, 1, 0
    %v124 = vsel %vm120, 1, 0
    %v125 = vsel %vm121, 1, 0
    %v126 = vcvt.s32.f32 %v122
    %v127 = vcvt.s32.f32 %v123
    %v128 = vcvt.s32.f32 %v124
    %v129 = vcvt.s32.f32 %v125
    %v130 = vlaneseq
    %v131 = vshrl.u32 %v130, 7
    %v132 = vadd.s32 %v131, 8
    %v133 = vld [vmem:[%s3] sm:$0x1]
    %v134 = vlaneseq
    %v135 = vshrl.u32 %v134, 7
    %v136 = vsub.s32 0, %v135
    %v137 = vrot.slane %v133, %v136
    %vm138 = vcmp.eq.s32.totalorder %v131, %v137
    %vm139 = vcmp.eq.s32.totalorder %v132, %v137
    %v140 = vsel %vm138, 1, 0
    %v141 = vsel %vm139, 1, 0
    %v142 = vcvt.s32.f32 %v140
    %v143 = vcvt.s32.f32 %v141
    %vm144 = vcmask 130048
    %v146 = vsel %vm144, %v126, 0
    %v149 = vsel %vm144, %v127, 0
    %v152 = vsel %vm144, %v128, 0
    %v155 = vsel %vm144, %v129, 0
    %157 = vmatprep.subr.mxu0 0.0
    %158 = vmatpush1.msra.mxu0 %v92
    %159 = vmatprep.subr.mxu0 0.0
    %160 = vmatpush1.msra.mxu0 %v93
    %161 = vmatprep.subr.mxu0 0.0
    %162 = vmatpush1.msra.mxu0 0.0
    %163 = vmatprep.subr.mxu0 0.0
    %164 = vmatpush1.msra.mxu0 0.0
    %165 = vmatprep.subr.mxu0 0.0
    %166 = vmatpush1.msra.mxu0 0.0
    %167 = vmatprep.subr.mxu0 0.0
    %168 = vmatpush1.msra.mxu0 0.0
    %169 = vmatprep.subr.mxu0 0.0
    %170 = vmatpush1.msra.mxu0 0.0
    %171 = vmatprep.subr.mxu0 0.0
    %172 = vmatpush1.msra.mxu0 0.0
    %173 = vmatprep.subr.mxu0 0.0
    %174 = vmatpush1.msra.mxu0 0.0
    %175 = vmatprep.subr.mxu0 0.0
    %176 = vmatpush1.msra.mxu0 0.0
    %177 = vmatprep.subr.mxu0 0.0
    %178 = vmatpush1.msra.mxu0 0.0
    %179 = vmatprep.subr.mxu0 0.0
    %180 = vmatpush1.msra.mxu0 0.0
    %181 = vmatprep.subr.mxu0 0.0
    %182 = vmatpush1.msra.mxu0 0.0
    %183 = vmatprep.subr.mxu0 0.0
    %184 = vmatpush1.msra.mxu0 0.0
    %185 = vmatprep.subr.mxu0 0.0
    %186 = vmatpush1.msra.mxu0 0.0
    %187 = vmatprep.subr.mxu0 0.0
    %188 = vmatpush1.msra.mxu0 0.0
    %189 = vmatprep.subr.mxu0 0.0
    %190 = vmatpush1.msra.mxu0 0.0
    %191 = vmatprep.subr.mxu0 0.0
    %192 = vmatpush1.msra.mxu0 0.0
    %193 = vmatprep.subr.mxu0 0.0
    %194 = vmatpush1.msra.mxu0 0.0
    %195 = vmatprep.subr.mxu0 0.0
    %196 = vmatpush1.msra.mxu0 0.0
    %197 = vmatprep.subr.mxu0 0.0
    %198 = vmatpush1.msra.mxu0 0.0
    %199 = vmatprep.subr.mxu0 0.0
    %200 = vmatpush1.msra.mxu0 0.0
    %201 = vmatprep.subr.mxu0 0.0
    %202 = vmatpush1.msra.mxu0 0.0
    %203 = vmatprep.subr.mxu0 0.0
    %204 = vmatpush1.msra.mxu0 0.0
    %205 = vmatprep.subr.mxu0 0.0
    %206 = vmatpush1.msra.mxu0 0.0
    %207 = vmatprep.subr.mxu0 0.0
    %208 = vmatpush1.msra.mxu0 0.0
    %209 = vmatprep.subr.mxu0 0.0
    %210 = vmatpush1.msra.mxu0 0.0
    %211 = vmatprep.subr.mxu0 0.0
    %212 = vmatpush1.msra.mxu0 0.0
    %213 = vmatprep.subr.mxu0 0.0
    %214 = vmatpush1.msra.mxu0 0.0
    %215 = vmatprep.subr.mxu0 0.0
    %216 = vmatpush1.msra.mxu0 0.0
    %217 = vmatprep.subr.mxu0 0.0
    %218 = vmatpush1.msra.mxu0 0.0
    %219 = vmatprep.subr.mxu0 0.0
    %220 = vmatpush1.msra.mxu0 0.0
    %221 = vmatprep.mubr.f32.mxu0 0.0
    %222 = vmatmul.mubr.f32.gmra.mrb[0].mxu0 %v146
    %v223 = vpop.f32.mrb[0].mxu0
    %v224 = vadd.f32 0.0, %v223
    %v225 = vpop.f32.mrb[0].mxu0
    %226 = vmatprep.mubr.f32.mxu0 0.0
    %227 = vmatmul.mubr.f32.gmra.mrb[0].mxu0 %v149
    %v228 = vpop.f32.mrb[0].mxu0
    %v229 = vadd.f32 0.0, %v228
    %v230 = vpop.f32.mrb[0].mxu0
    %231 = vmatprep.mubr.f32.mxu0 0.0
    %232 = vmatmul.mubr.f32.gmra.mrb[0].mxu0 %v152
    %v233 = vpop.f32.mrb[0].mxu0
    %v234 = vadd.f32 0.0, %v233
    %v235 = vpop.f32.mrb[0].mxu0
    %236 = vmatprep.mubr.f32.mxu0 0.0
    %237 = vmatmul.mubr.f32.gmra.mrb[0].mxu0 %v155
    %v238 = vpop.f32.mrb[0].mxu0
    %v239 = vadd.f32 0.0, %v238
    %v240 = vpop.f32.mrb[0].mxu0
    %241 = vdwg.mxu0
    %v242 = vpack.c.bf16 %v229, %v224
    %v243 = vpack.c.bf16 %v239, %v234
    %v244 = vpack.c.bf16 %v93, %v92
    %v245 = vld [vmem:[%s6] sm:$0xf]
    %v248 = vunpack.c.l.s4 1983009808
    %v249 = vunpack.c.0.s8 %v248
    %v250 = vlaneseq
    %v251 = vshrl.u32 %v250, 7
    %v252 = vsub.s32 %v249, %v251
    %v253 = vrot.slane %v245, %v252
    %v254 = vcombine.high %v253, %v253
    %vm255 = vcmask 31744
    %v257 = vsel %vm255, %v244, 0
    %vm259 = vcmask 1041408
    %v261 = vsel %vm259, %v253, 0
    %v264 = vsel %vm259, %v254, 0
    %266 = vmatprep.subr.bf16.mxu0 %v264
    %267 = vmatpush1.bf16.msra.mxu0 %v261
    %268 = vmatprep.subr.bf16.mxu0 0
    %269 = vmatpush1.bf16.msra.mxu0 0
    %270 = vmatprep.subr.bf16.mxu0 0
    %271 = vmatpush1.bf16.msra.mxu0 0
    %272 = vmatprep.subr.bf16.mxu0 0
    %273 = vmatpush1.bf16.msra.mxu0 0
    %274 = vmatprep.subr.bf16.mxu0 0
    %275 = vmatpush1.bf16.msra.mxu0 0
    %276 = vmatprep.subr.bf16.mxu0 0
    %277 = vmatpush1.bf16.msra.mxu0 0
    %278 = vmatprep.subr.bf16.mxu0 0
    %279 = vmatpush1.bf16.msra.mxu0 0
    %280 = vmatprep.subr.bf16.mxu0 0
    %281 = vmatpush1.bf16.msra.mxu0 0
    %282 = vmatprep.subr.bf16.mxu0 0
    %283 = vmatpush1.bf16.msra.mxu0 0
    %284 = vmatprep.subr.bf16.mxu0 0
    %285 = vmatpush1.bf16.msra.mxu0 0
    %286 = vmatprep.subr.bf16.mxu0 0
    %287 = vmatpush1.bf16.msra.mxu0 0
    %288 = vmatprep.subr.bf16.mxu0 0
    %289 = vmatpush1.bf16.msra.mxu0 0
    %290 = vmatprep.subr.bf16.mxu0 0
    %291 = vmatpush1.bf16.msra.mxu0 0
    %292 = vmatprep.subr.bf16.mxu0 0
    %293 = vmatpush1.bf16.msra.mxu0 0
    %294 = vmatprep.subr.bf16.mxu0 0
    %295 = vmatpush1.bf16.msra.mxu0 0
    %296 = vmatprep.subr.bf16.mxu0 0
    %297 = vmatpush1.bf16.msra.mxu0 0
    %298 = vmatprep.mubr.bf16.mxu0 0
    %299 = vmatmul.mubr.bf16.gmra.mrb[0].mxu0 %v257
    %v300 = vpop.f32.mrb[0].mxu0
    %v301 = vadd.f32 0.0, %v300
    %v302 = vpop.f32.mrb[0].mxu0
    %v303 = vadd.f32 0.0, %v302
    %v304 = vpop.f32.mrb[0].mxu0
    %v305 = vadd.f32 0.0, %v304
    %v306 = vpop.f32.mrb[0].mxu0
    %v307 = vadd.f32 0.0, %v306
    %308 = vdwg.mxu0
    %310 = vset.pattern.permute.xlu0 0
    %311 = vperm.xlu0 %310, %v242
    %v312 = vpop.permute.xlu0 %311
    %315 = vset.pattern.permute.xlu0 0
    %316 = vperm.xlu0 %315, %v243
    %v317 = vpop.permute.xlu0 %316
    %v323 = vunpack.c.l.b16 %v94
    %v324 = vunpack.c.l.b16 %v95
    %v325 = vunpack.c.l.b16 %v96
    %v326 = vunpack.c.l.b16 %v97
    %v327 = vpack.c.b16 %v324, %v323
    %v328 = vpack.c.b16 %v326, %v325
    %v331 = vmul.bf16 %v312, %v327
    %v332 = vmul.bf16 %v317, %v328
    %333 = vset.pattern.permute.xlu0 1
    %334 = vperm.xlu0 %333, %v242
    %v335 = vpop.permute.xlu0 %334
    %337 = vset.pattern.permute.xlu0 1
    %338 = vperm.xlu0 %337, %v243
    %v339 = vpop.permute.xlu0 %338
    %v341 = vmul.bf16 %v335, %v327
    %v342 = vmul.bf16 %v339, %v328
    %343 = vset.pattern.permute.xlu0 2
    %344 = vperm.xlu0 %343, %v242
    %v345 = vpop.permute.xlu0 %344
    %347 = vset.pattern.permute.xlu0 2
    %348 = vperm.xlu0 %347, %v243
    %v349 = vpop.permute.xlu0 %348
    %v351 = vmul.bf16 %v345, %v327
    %v352 = vmul.bf16 %v349, %v328
    %353 = vset.pattern.permute.xlu0 3
    %354 = vperm.xlu0 %353, %v242
    %v355 = vpop.permute.xlu0 %354
    %357 = vset.pattern.permute.xlu0 3
    %358 = vperm.xlu0 %357, %v243
    %v359 = vpop.permute.xlu0 %358
    %v361 = vmul.bf16 %v355, %v327
    %v362 = vmul.bf16 %v359, %v328
    %v363 = vld [vmem:[#allocation2] sm:$0xf]
    %v364 = vld [vmem:[#allocation2 + $0x4] sm:$0xf]
    %v365 = vld [vmem:[#allocation2 + $0x8] sm:$0xf]
    %v366 = vld [vmem:[#allocation2 + $0xc] sm:$0xf]
    %v367 = vld [vmem:[#allocation2 + $0x10] sm:$0xf]
    %v368 = vld [vmem:[#allocation2 + $0x14] sm:$0xf]
    %v369 = vld [vmem:[#allocation2 + $0x18] sm:$0xf]
    %v370 = vld [vmem:[#allocation2 + $0x1c] sm:$0xf]
    %v371 = vld [vmem:[#allocation2 + $0x20] sm:$0xf]
    %v372 = vld [vmem:[#allocation2 + $0x24] sm:$0xf]
    %v373 = vld [vmem:[#allocation2 + $0x28] sm:$0xf]
    %v374 = vld [vmem:[#allocation2 + $0x2c] sm:$0xf]
    %v375 = vld [vmem:[#allocation2 + $0x30] sm:$0xf]
    %v376 = vld [vmem:[#allocation2 + $0x34] sm:$0xf]
    %v377 = vld [vmem:[#allocation2 + $0x38] sm:$0xf]
    %v378 = vld [vmem:[#allocation2 + $0x3c] sm:$0xf]
    %v379 = vld [vmem:[#allocation2 + $0x40] sm:$0xf]
    %v380 = vld [vmem:[#allocation2 + $0x44] sm:$0xf]
    %v381 = vld [vmem:[#allocation2 + $0x48] sm:$0xf]
    %v382 = vld [vmem:[#allocation2 + $0x4c] sm:$0xf]
    %v383 = vld [vmem:[#allocation2 + $0x50] sm:$0xf]
    %v384 = vld [vmem:[#allocation2 + $0x54] sm:$0xf]
    %v385 = vld [vmem:[#allocation2 + $0x58] sm:$0xf]
    %v386 = vld [vmem:[#allocation2 + $0x5c] sm:$0xf]
    %v387 = vld [vmem:[#allocation2 + $0x60] sm:$0xf]
    %v388 = vld [vmem:[#allocation2 + $0x64] sm:$0xf]
    %v389 = vld [vmem:[#allocation2 + $0x68] sm:$0xf]
    %v390 = vld [vmem:[#allocation2 + $0x6c] sm:$0xf]
    %v391 = vld [vmem:[#allocation2 + $0x70] sm:$0xf]
    %v392 = vld [vmem:[#allocation2 + $0x74] sm:$0xf]
    %v393 = vld [vmem:[#allocation2 + $0x78] sm:$0xf]
    %v394 = vld [vmem:[#allocation2 + $0x7c] sm:$0xf]
    %v395 = vld [vmem:[#allocation2 + $0x80] sm:$0xf]
    %v396 = vld [vmem:[#allocation2 + $0x84] sm:$0xf]
    %v397 = vld [vmem:[#allocation2 + $0x88] sm:$0xf]
    %v398 = vld [vmem:[#allocation2 + $0x8c] sm:$0xf]
    %v399 = vld [vmem:[#allocation2 + $0x90] sm:$0xf]
    %v400 = vld [vmem:[#allocation2 + $0x94] sm:$0xf]
    %v401 = vld [vmem:[#allocation2 + $0x98] sm:$0xf]
    %v402 = vld [vmem:[#allocation2 + $0x9c] sm:$0xf]
    %v403 = vld [vmem:[#allocation2 + $0xa0] sm:$0xf]
    %v404 = vld [vmem:[#allocation2 + $0xa4] sm:$0xf]
    %v405 = vld [vmem:[#allocation2 + $0xa8] sm:$0xf]
    %v406 = vld [vmem:[#allocation2 + $0xac] sm:$0xf]
    %v407 = vld [vmem:[#allocation2 + $0xb0] sm:$0xf]
    %v408 = vld [vmem:[#allocation2 + $0xb4] sm:$0xf]
    %v409 = vld [vmem:[#allocation2 + $0xb8] sm:$0xf]
    %v410 = vld [vmem:[#allocation2 + $0xbc] sm:$0xf]
    %v411 = vld [vmem:[#allocation2 + $0xc0] sm:$0xf]
    %v412 = vld [vmem:[#allocation2 + $0xc4] sm:$0xf]
    %v413 = vld [vmem:[#allocation2 + $0xc8] sm:$0xf]
    %v414 = vld [vmem:[#allocation2 + $0xcc] sm:$0xf]
    %v415 = vld [vmem:[#allocation2 + $0xd0] sm:$0xf]
    %v416 = vld [vmem:[#allocation2 + $0xd4] sm:$0xf]
    %v417 = vld [vmem:[#allocation2 + $0xd8] sm:$0xf]
    %v418 = vld [vmem:[#allocation2 + $0xdc] sm:$0xf]
    %v419 = vld [vmem:[#allocation2 + $0xe0] sm:$0xf]
    %v420 = vld [vmem:[#allocation2 + $0xe4] sm:$0xf]
    %v421 = vld [vmem:[#allocation2 + $0xe8] sm:$0xf]
    %v422 = vld [vmem:[#allocation2 + $0xec] sm:$0xf]
    %v423 = vld [vmem:[#allocation2 + $0xf0] sm:$0xf]
    %v424 = vld [vmem:[#allocation2 + $0xf4] sm:$0xf]
    %v425 = vld [vmem:[#allocation2 + $0xf8] sm:$0xf]
    %v426 = vld [vmem:[#allocation2 + $0xfc] sm:$0xf]
    %v491 = vunpack.c.l.b16 %v363
    %v492 = vunpack.c.l.b16 %v364
    %v493 = vunpack.c.l.b16 %v365
    %v494 = vunpack.c.l.b16 %v366
    %v495 = vunpack.c.l.b16 %v367
    %v496 = vunpack.c.l.b16 %v368
    %v497 = vunpack.c.l.b16 %v369
    %v498 = vunpack.c.l.b16 %v370
    %v499 = vunpack.c.l.b16 %v371
    %v500 = vunpack.c.l.b16 %v372
    %v501 = vunpack.c.l.b16 %v373
    %v502 = vunpack.c.l.b16 %v374
    %v503 = vunpack.c.l.b16 %v375
    %v504 = vunpack.c.l.b16 %v376
    %v505 = vunpack.c.l.b16 %v377
    %v506 = vunpack.c.l.b16 %v378
    %v507 = vunpack.c.l.b16 %v379
    %v508 = vunpack.c.l.b16 %v380
    %v509 = vunpack.c.l.b16 %v381
    %v510 = vunpack.c.l.b16 %v382
    %v511 = vunpack.c.l.b16 %v383
    %v512 = vunpack.c.l.b16 %v384
    %v513 = vunpack.c.l.b16 %v385
    %v514 = vunpack.c.l.b16 %v386
    %v515 = vunpack.c.l.b16 %v387
    %v516 = vunpack.c.l.b16 %v388
    %v517 = vunpack.c.l.b16 %v389
    %v518 = vunpack.c.l.b16 %v390
    %v519 = vunpack.c.l.b16 %v391
    %v520 = vunpack.c.l.b16 %v392
    %v521 = vunpack.c.l.b16 %v393
    %v522 = vunpack.c.l.b16 %v394
    %v523 = vunpack.c.l.b16 %v395
    %v524 = vunpack.c.l.b16 %v396
    %v525 = vunpack.c.l.b16 %v397
    %v526 = vunpack.c.l.b16 %v398
    %v527 = vunpack.c.l.b16 %v399
    %v528 = vunpack.c.l.b16 %v400
    %v529 = vunpack.c.l.b16 %v401
    %v530 = vunpack.c.l.b16 %v402
    %v531 = vunpack.c.l.b16 %v403
    %v532 = vunpack.c.l.b16 %v404
    %v533 = vunpack.c.l.b16 %v405
    %v534 = vunpack.c.l.b16 %v406
    %v535 = vunpack.c.l.b16 %v407
    %v536 = vunpack.c.l.b16 %v408
    %v537 = vunpack.c.l.b16 %v409
    %v538 = vunpack.c.l.b16 %v410
    %v539 = vunpack.c.l.b16 %v411
    %v540 = vunpack.c.l.b16 %v412
    %v541 = vunpack.c.l.b16 %v413
    %v542 = vunpack.c.l.b16 %v414
    %v543 = vunpack.c.l.b16 %v415
    %v544 = vunpack.c.l.b16 %v416
    %v545 = vunpack.c.l.b16 %v417
    %v546 = vunpack.c.l.b16 %v418
    %v547 = vunpack.c.l.b16 %v419
    %v548 = vunpack.c.l.b16 %v420
    %v549 = vunpack.c.l.b16 %v421
    %v550 = vunpack.c.l.b16 %v422
    %v551 = vunpack.c.l.b16 %v423
    %v552 = vunpack.c.l.b16 %v424
    %v553 = vunpack.c.l.b16 %v425
    %v554 = vunpack.c.l.b16 %v426
    %v555 = vpack.c.b16 %v492, %v491
    %v556 = vpack.c.b16 %v494, %v493
    %v557 = vpack.c.b16 %v496, %v495
    %v558 = vpack.c.b16 %v498, %v497
    %v559 = vpack.c.b16 %v500, %v499
    %v560 = vpack.c.b16 %v502, %v501
    %v561 = vpack.c.b16 %v504, %v503
    %v562 = vpack.c.b16 %v506, %v505
    %v563 = vpack.c.b16 %v508, %v507
    %v564 = vpack.c.b16 %v510, %v509
    %v565 = vpack.c.b16 %v512, %v511
    %v566 = vpack.c.b16 %v514, %v513
    %v567 = vpack.c.b16 %v516, %v515
    %v568 = vpack.c.b16 %v518, %v517
    %v569 = vpack.c.b16 %v520, %v519
    %v570 = vpack.c.b16 %v522, %v521
    %v571 = vpack.c.b16 %v524, %v523
    %v572 = vpack.c.b16 %v526, %v525
    %v573 = vpack.c.b16 %v528, %v527
    %v574 = vpack.c.b16 %v530, %v529
    %v575 = vpack.c.b16 %v532, %v531
    %v576 = vpack.c.b16 %v534, %v533
    %v577 = vpack.c.b16 %v536, %v535
    %v578 = vpack.c.b16 %v538, %v537
    %v579 = vpack.c.b16 %v540, %v539
    %v580 = vpack.c.b16 %v542, %v541
    %v581 = vpack.c.b16 %v544, %v543
    %v582 = vpack.c.b16 %v546, %v545
    %v583 = vpack.c.b16 %v548, %v547
    %v584 = vpack.c.b16 %v550, %v549
    %v585 = vpack.c.b16 %v552, %v551
    %v586 = vpack.c.b16 %v554, %v553
    %619 = vmatprep.subr.bf16.mxu0 0
    %620 = vmatpush1.bf16.msra.mxu0 %v555
    %621 = vmatprep.subr.bf16.mxu0 0
    %622 = vmatpush1.bf16.msra.mxu0 %v556
    %623 = vmatprep.subr.bf16.mxu0 0
    %624 = vmatpush1.bf16.msra.mxu0 %v557
    %625 = vmatprep.subr.bf16.mxu0 0
    %626 = vmatpush1.bf16.msra.mxu0 %v558
    %627 = vmatprep.subr.bf16.mxu0 0
    %628 = vmatpush1.bf16.msra.mxu0 %v559
    %629 = vmatprep.subr.bf16.mxu0 0
    %630 = vmatpush1.bf16.msra.mxu0 %v560
    %631 = vmatprep.subr.bf16.mxu0 0
    %632 = vmatpush1.bf16.msra.mxu0 %v561
    %633 = vmatprep.subr.bf16.mxu0 0
    %634 = vmatpush1.bf16.msra.mxu0 %v562
    %635 = vmatprep.subr.bf16.mxu0 0
    %636 = vmatpush1.bf16.msra.mxu0 %v563
    %637 = vmatprep.subr.bf16.mxu0 0
    %638 = vmatpush1.bf16.msra.mxu0 %v564
    %639 = vmatprep.subr.bf16.mxu0 0
    %640 = vmatpush1.bf16.msra.mxu0 %v565
    %641 = vmatprep.subr.bf16.mxu0 0
    %642 = vmatpush1.bf16.msra.mxu0 %v566
    %643 = vmatprep.subr.bf16.mxu0 0
    %644 = vmatpush1.bf16.msra.mxu0 %v567
    %645 = vmatprep.subr.bf16.mxu0 0
    %646 = vmatpush1.bf16.msra.mxu0 %v568
    %647 = vmatprep.subr.bf16.mxu0 0
    %648 = vmatpush1.bf16.msra.mxu0 %v569
    %649 = vmatprep.subr.bf16.mxu0 0
    %650 = vmatpush1.bf16.msra.mxu0 %v570
    %651 = vmatprep.mubr.bf16.mxu0 %v341
    %652 = vmatmul.mubr.bf16.gmra.mrb[0].mxu0 %v331
    %v653 = vpop.f32.mrb[0].mxu0
    %v654 = vadd.f32 0.0, %v653
    %v655 = vpop.f32.mrb[0].mxu0
    %v656 = vpop.f32.mrb[0].mxu0
    %v657 = vadd.f32 0.0, %v656
    %v658 = vpop.f32.mrb[0].mxu0
    %659 = vmatprep.mubr.bf16.mxu0 %v342
    %660 = vmatmul.mubr.bf16.gmra.mrb[0].mxu0 %v332
    %v661 = vpop.f32.mrb[0].mxu0
    %v662 = vadd.f32 0.0, %v661
    %v663 = vpop.f32.mrb[0].mxu0
    %v664 = vpop.f32.mrb[0].mxu0
    %v665 = vadd.f32 0.0, %v664
    %v666 = vpop.f32.mrb[0].mxu0
    %667 = vdwg.mxu0
    %668 = vmatprep.subr.bf16.mxu0 0
    %669 = vmatpush1.bf16.msra.mxu0 %v571
    %670 = vmatprep.subr.bf16.mxu0 0
    %671 = vmatpush1.bf16.msra.mxu0 %v572
    %672 = vmatprep.subr.bf16.mxu0 0
    %673 = vmatpush1.bf16.msra.mxu0 %v573
    %674 = vmatprep.subr.bf16.mxu0 0
    %675 = vmatpush1.bf16.msra.mxu0 %v574
    %676 = vmatprep.subr.bf16.mxu0 0
    %677 = vmatpush1.bf16.msra.mxu0 %v575
    %678 = vmatprep.subr.bf16.mxu0 0
    %679 = vmatpush1.bf16.msra.mxu0 %v576
    %680 = vmatprep.subr.bf16.mxu0 0
    %681 = vmatpush1.bf16.msra.mxu0 %v577
    %682 = vmatprep.subr.bf16.mxu0 0
    %683 = vmatpush1.bf16.msra.mxu0 %v578
    %684 = vmatprep.subr.bf16.mxu0 0
    %685 = vmatpush1.bf16.msra.mxu0 %v579
    %686 = vmatprep.subr.bf16.mxu0 0
    %687 = vmatpush1.bf16.msra.mxu0 %v580
    %688 = vmatprep.subr.bf16.mxu0 0
    %689 = vmatpush1.bf16.msra.mxu0 %v581
    %690 = vmatprep.subr.bf16.mxu0 0
    %691 = vmatpush1.bf16.msra.mxu0 %v582
    %692 = vmatprep.subr.bf16.mxu0 0
    %693 = vmatpush1.bf16.msra.mxu0 %v583
    %694 = vmatprep.subr.bf16.mxu0 0
    %695 = vmatpush1.bf16.msra.mxu0 %v584
    %696 = vmatprep.subr.bf16.mxu0 0
    %697 = vmatpush1.bf16.msra.mxu0 %v585
    %698 = vmatprep.subr.bf16.mxu0 0
    %699 = vmatpush1.bf16.msra.mxu0 %v586
    %700 = vmatprep.mubr.bf16.mxu0 %v361
    %701 = vmatmul.mubr.bf16.gmra.mrb[0].mxu0 %v351
    %v702 = vpop.f32.mrb[0].mxu0
    %v703 = vadd.f32 %v654, %v702
    %v704 = vpop.f32.mrb[0].mxu0
    %v705 = vpop.f32.mrb[0].mxu0
    %v706 = vadd.f32 %v657, %v705
    %v707 = vpop.f32.mrb[0].mxu0
    %708 = vmatprep.mubr.bf16.mxu0 %v362
    %709 = vmatmul.mubr.bf16.gmra.mrb[0].mxu0 %v352
    %v710 = vpop.f32.mrb[0].mxu0
    %v711 = vadd.f32 %v662, %v710
    %v712 = vpop.f32.mrb[0].mxu0
    %v713 = vpop.f32.mrb[0].mxu0
    %v714 = vadd.f32 %v665, %v713
    %v715 = vpop.f32.mrb[0].mxu0
    %716 = vdwg.mxu0
    %v717 = vld [vmem:[%s15] sm:$0x3]
    %v718 = vsel %vm255, %v242, 0
    %v720 = vsel %vm255, %v243, 0
    %v723 = vsel %vm259, %v717, 0
    %725 = vmatprep.subr.bf16.mxu0 0
    %726 = vmatpush1.bf16.msra.mxu0 %v723
    %727 = vmatprep.subr.bf16.mxu0 0
    %728 = vmatpush1.bf16.msra.mxu0 0
    %729 = vmatprep.subr.bf16.mxu0 0
    %730 = vmatpush1.bf16.msra.mxu0 0
    %731 = vmatprep.subr.bf16.mxu0 0
    %732 = vmatpush1.bf16.msra.mxu0 0
    %733 = vmatprep.subr.bf16.mxu0 0
    %734 = vmatpush1.bf16.msra.mxu0 0
    %735 = vmatprep.subr.bf16.mxu0 0
    %736 = vmatpush1.bf16.msra.mxu0 0
    %737 = vmatprep.subr.bf16.mxu0 0
    %738 = vmatpush1.bf16.msra.mxu0 0
    %739 = vmatprep.subr.bf16.mxu0 0
    %740 = vmatpush1.bf16.msra.mxu0 0
    %741 = vmatprep.subr.bf16.mxu0 0
    %742 = vmatpush1.bf16.msra.mxu0 0
    %743 = vmatprep.subr.bf16.mxu0 0
    %744 = vmatpush1.bf16.msra.mxu0 0
    %745 = vmatprep.subr.bf16.mxu0 0
    %746 = vmatpush1.bf16.msra.mxu0 0
    %747 = vmatprep.subr.bf16.mxu0 0
    %748 = vmatpush1.bf16.msra.mxu0 0
    %749 = vmatprep.subr.bf16.mxu0 0
    %750 = vmatpush1.bf16.msra.mxu0 0
    %751 = vmatprep.subr.bf16.mxu0 0
    %752 = vmatpush1.bf16.msra.mxu0 0
    %753 = vmatprep.subr.bf16.mxu0 0
    %754 = vmatpush1.bf16.msra.mxu0 0
    %755 = vmatprep.subr.bf16.mxu0 0
    %756 = vmatpush1.bf16.msra.mxu0 0
    %757 = vmatprep.mubr.bf16.mxu0 0
    %758 = vmatmul.mubr.bf16.gmra.mrb[0].mxu0 %v718
    %v759 = vpop.f32.mrb[0].mxu0
    %v760 = vadd.f32 0.0, %v759
    %v761 = vpop.f32.mrb[0].mxu0
    %v762 = vpop.f32.mrb[0].mxu0
    %v763 = vadd.f32 0.0, %v762
    %v764 = vpop.f32.mrb[0].mxu0
    %765 = vmatprep.mubr.bf16.mxu0 0
    %766 = vmatmul.mubr.bf16.gmra.mrb[0].mxu0 %v720
    %v767 = vpop.f32.mrb[0].mxu0
    %v768 = vadd.f32 0.0, %v767
    %v769 = vpop.f32.mrb[0].mxu0
    %v770 = vpop.f32.mrb[0].mxu0
    %v771 = vadd.f32 0.0, %v770
    %v772 = vpop.f32.mrb[0].mxu0
    %773 = vdwg.mxu0
    %vm774 = vcmask 261120
    %v776 = vsel %vm774, %v142, 0
    %v779 = vsel %vm774, %v143, 0
    %781 = vmatprep.subr.mxu0 %v760
    %782 = vmatpush1.msra.mxu0 %v703
    %783 = vmatprep.subr.mxu0 %v763
    %784 = vmatpush1.msra.mxu0 %v706
    %785 = vmatprep.subr.mxu0 %v768
    %786 = vmatpush1.msra.mxu0 %v711
    %787 = vmatprep.subr.mxu0 %v771
    %788 = vmatpush1.msra.mxu0 %v714
    %789 = vmatprep.subr.mxu0 0.0
    %790 = vmatpush1.msra.mxu0 0.0
    %791 = vmatprep.subr.mxu0 0.0
    %792 = vmatpush1.msra.mxu0 0.0
    %793 = vmatprep.subr.mxu0 0.0
    %794 = vmatpush1.msra.mxu0 0.0
    %795 = vmatprep.subr.mxu0 0.0
    %796 = vmatpush1.msra.mxu0 0.0
    %797 = vmatprep.subr.mxu0 0.0
    %798 = vmatpush1.msra.mxu0 0.0
    %799 = vmatprep.subr.mxu0 0.0
    %800 = vmatpush1.msra.mxu0 0.0
    %801 = vmatprep.subr.mxu0 0.0
    %802 = vmatpush1.msra.mxu0 0.0
    %803 = vmatprep.subr.mxu0 0.0
    %804 = vmatpush1.msra.mxu0 0.0
    %805 = vmatprep.subr.mxu0 0.0
    %806 = vmatpush1.msra.mxu0 0.0
    %807 = vmatprep.subr.mxu0 0.0
    %808 = vmatpush1.msra.mxu0 0.0
    %809 = vmatprep.subr.mxu0 0.0
    %810 = vmatpush1.msra.mxu0 0.0
    %811 = vmatprep.subr.mxu0 0.0
    %812 = vmatpush1.msra.mxu0 0.0
    %813 = vmatprep.subr.mxu0 0.0
    %814 = vmatpush1.msra.mxu0 0.0
    %815 = vmatprep.subr.mxu0 0.0
    %816 = vmatpush1.msra.mxu0 0.0
    %817 = vmatprep.subr.mxu0 0.0
    %818 = vmatpush1.msra.mxu0 0.0
    %819 = vmatprep.subr.mxu0 0.0
    %820 = vmatpush1.msra.mxu0 0.0
    %821 = vmatprep.subr.mxu0 0.0
    %822 = vmatpush1.msra.mxu0 0.0
    %823 = vmatprep.subr.mxu0 0.0
    %824 = vmatpush1.msra.mxu0 0.0
    %825 = vmatprep.subr.mxu0 0.0
    %826 = vmatpush1.msra.mxu0 0.0
    %827 = vmatprep.subr.mxu0 0.0
    %828 = vmatpush1.msra.mxu0 0.0
    %829 = vmatprep.subr.mxu0 0.0
    %830 = vmatpush1.msra.mxu0 0.0
    %831 = vmatprep.subr.mxu0 0.0
    %832 = vmatpush1.msra.mxu0 0.0
    %833 = vmatprep.subr.mxu0 0.0
    %834 = vmatpush1.msra.mxu0 0.0
    %835 = vmatprep.subr.mxu0 0.0
    %836 = vmatpush1.msra.mxu0 0.0
    %837 = vmatprep.subr.mxu0 0.0
    %838 = vmatpush1.msra.mxu0 0.0
    %839 = vmatprep.subr.mxu0 0.0
    %840 = vmatpush1.msra.mxu0 0.0
    %841 = vmatprep.subr.mxu0 0.0
    %842 = vmatpush1.msra.mxu0 0.0
    %843 = vmatprep.subr.mxu0 0.0
    %844 = vmatpush1.msra.mxu0 0.0
    %845 = vmatprep.mubr.f32.mxu0 0.0
    %846 = vmatmul.mubr.f32.gmra.mrb[0].mxu0 %v776
    %v847 = vpop.f32.mrb[0].mxu0
    %v848 = vadd.f32 0.0, %v847
    %v849 = vpop.f32.mrb[0].mxu0
    %v850 = vadd.f32 0.0, %v849
    %851 = vmatprep.mubr.f32.mxu0 0.0
    %852 = vmatmul.mubr.f32.gmra.mrb[0].mxu0 %v779
    %v853 = vpop.f32.mrb[0].mxu0
    %v854 = vadd.f32 0.0, %v853
    %v855 = vpop.f32.mrb[0].mxu0
    %v856 = vadd.f32 0.0, %v855
    %857 = vdwg.mxu0
    %859 = vset.pattern.permute.xlu0 0
    %860 = vperm.xlu0 %859, %v98
    %v861 = vpop.permute.xlu0 %860
    %864 = vset.pattern.permute.xlu0 0
    %865 = vperm.xlu0 %864, %v99
    %v866 = vpop.permute.xlu0 %865
    %v868 = vmul.f32 %v848, %v861
    %v869 = vmul.f32 %v850, %v861
    %v870 = vmul.f32 %v854, %v866
    %v871 = vmul.f32 %v856, %v866
    %v872 = vadd.f32 %v868, %v301
    %v873 = vadd.f32 %v870, %v305
    %v874 = vld [vmem:[%s7] sm:$0x1]
    %v876 = vlaneseq
    %v877 = vshrl.u32 %v876, 7
    %v878 = vsub.s32 0, %v877
    %v879 = vrot.slane %v874, %v878
    %v881 = vadd.f32 %v872, %v879
    %v882 = vadd.f32 %v873, %v879
    %v883 = vld [vmem:[%s8] sm:$0x1]
    %v884 = vld [vmem:[%s9] sm:$0x1]
    %v885 = vadd.f32 %v881, %v882
    %v886 = vrot.slane %v885, 4
    %v887 = vadd.f32 %v885, %v886
    %v888 = vrot.slane %v887, 2
    %v889 = vadd.f32 %v887, %v888
    %v890 = vrot.slane %v889, 1
    %v891 = vadd.f32 %v889, %v890
    %v892 = vrcp.pop 16.0
    %v893 = vmul.f32 %v891, %v892
    %v894 = vsub.f32 %v881, %v893
    %v895 = vsub.f32 %v882, %v893
    %v896 = vmul.f32 %v894, %v894
    %v897 = vmul.f32 %v895, %v895
    %v898 = vadd.f32 %v896, %v897
    %v899 = vrot.slane %v898, 4
    %v900 = vadd.f32 %v898, %v899
    %v901 = vrot.slane %v900, 2
    %v902 = vadd.f32 %v900, %v901
    %v903 = vrot.slane %v902, 1
    %v904 = vadd.f32 %v902, %v903
    %v905 = vmul.f32 %v904, %v892
    %v906 = vadd.f32 %v905, 1e-05
    %v907 = vrsqrt.pop %v906
    %v908 = vmul.f32 %v894, %v907
    %v909 = vmul.f32 %v895, %v907
    %v911 = vlaneseq
    %v912 = vshrl.u32 %v911, 7
    %v913 = vsub.s32 0, %v912
    %v914 = vrot.slane %v883, %v913
    %v916 = vmul.f32 %v908, %v914
    %v917 = vmul.f32 %v909, %v914
    %v919 = vlaneseq
    %v920 = vshrl.u32 %v919, 7
    %v921 = vsub.s32 0, %v920
    %v922 = vrot.slane %v884, %v921
    %v924 = vadd.f32 %v916, %v922
    %v925 = vadd.f32 %v917, %v922
    %vm926 = vcmp.gt.f32.partialorder %v924, 0.0
    %vm927 = vcmp.gt.f32.partialorder %v925, 0.0
    %v928 = vmin.f32 %v924, 0.0
    %v929 = vmin.f32 %v925, 0.0
    %v930 = vmul.f32 %v928, 1.442695
    %v931 = vpow.pop %v930
    %v932 = vmul.f32 %v929, 1.442695
    %v933 = vpow.pop %v932
    %v934 = vsub.f32 %v931, 1.0
    %v935 = vsub.f32 %v933, 1.0
    %v936 = vsel %vm926, %v924, %v934
    %v937 = vsel %vm927, %v925, %v935
    %v938 = vadd.f32 %v869, %v303
    %v939 = vadd.f32 %v871, %v307
    %v940 = vld [vmem:[%s16] sm:$0x1]
    %v942 = vlaneseq
    %v943 = vshrl.u32 %v942, 7
    %v944 = vsub.s32 0, %v943
    %v945 = vrot.slane %v940, %v944
    %v947 = vadd.f32 %v938, %v945
    %v948 = vadd.f32 %v939, %v945
    %v949 = vld [vmem:[%s17] sm:$0x1]
    %v950 = vld [vmem:[%s18] sm:$0x1]
    %v951 = vadd.f32 %v947, %v948
    %v952 = vrot.slane %v951, 4
    %v953 = vadd.f32 %v951, %v952
    %v954 = vrot.slane %v953, 2
    %v955 = vadd.f32 %v953, %v954
    %v956 = vrot.slane %v955, 1
    %v957 = vadd.f32 %v955, %v956
    %v958 = vmul.f32 %v957, %v892
    %v959 = vsub.f32 %v947, %v958
    %v960 = vsub.f32 %v948, %v958
    %v961 = vmul.f32 %v959, %v959
    %v962 = vmul.f32 %v960, %v960
    %v963 = vadd.f32 %v961, %v962
    %v964 = vrot.slane %v963, 4
    %v965 = vadd.f32 %v963, %v964
    %v966 = vrot.slane %v965, 2
    %v967 = vadd.f32 %v965, %v966
    %v968 = vrot.slane %v967, 1
    %v969 = vadd.f32 %v967, %v968
    %v970 = vmul.f32 %v969, %v892
    %v971 = vadd.f32 %v970, 1e-05
    %v972 = vrsqrt.pop %v971
    %v973 = vmul.f32 %v959, %v972
    %v974 = vmul.f32 %v960, %v972
    %v976 = vlaneseq
    %v977 = vshrl.u32 %v976, 7
    %v978 = vsub.s32 0, %v977
    %v979 = vrot.slane %v949, %v978
    %v981 = vmul.f32 %v973, %v979
    %v982 = vmul.f32 %v974, %v979
    %v984 = vlaneseq
    %v985 = vshrl.u32 %v984, 7
    %v986 = vsub.s32 0, %v985
    %v987 = vrot.slane %v950, %v986
    %v989 = vadd.f32 %v981, %v987
    %v990 = vadd.f32 %v982, %v987
    %991 = vmatprep.subr.mxu0 0.0
    %992 = vmatpush1.msra.mxu0 %v936
    %993 = vmatprep.subr.mxu0 0.0
    %994 = vmatpush1.msra.mxu0 %v937
    %995 = vmatprep.subr.mxu0 0.0
    %996 = vmatpush1.msra.mxu0 0.0
    %997 = vmatprep.subr.mxu0 0.0
    %998 = vmatpush1.msra.mxu0 0.0
    %999 = vmatprep.subr.mxu0 0.0
    %1000 = vmatpush1.msra.mxu0 0.0
    %1001 = vmatprep.subr.mxu0 0.0
    %1002 = vmatpush1.msra.mxu0 0.0
    %1003 = vmatprep.subr.mxu0 0.0
    %1004 = vmatpush1.msra.mxu0 0.0
    %1005 = vmatprep.subr.mxu0 0.0
    %1006 = vmatpush1.msra.mxu0 0.0
    %1007 = vmatprep.subr.mxu0 0.0
    %1008 = vmatpush1.msra.mxu0 0.0
    %1009 = vmatprep.subr.mxu0 0.0
    %1010 = vmatpush1.msra.mxu0 0.0
    %1011 = vmatprep.subr.mxu0 0.0
    %1012 = vmatpush1.msra.mxu0 0.0
    %1013 = vmatprep.subr.mxu0 0.0
    %1014 = vmatpush1.msra.mxu0 0.0
    %1015 = vmatprep.subr.mxu0 0.0
    %1016 = vmatpush1.msra.mxu0 0.0
    %1017 = vmatprep.subr.mxu0 0.0
    %1018 = vmatpush1.msra.mxu0 0.0
    %1019 = vmatprep.subr.mxu0 0.0
    %1020 = vmatpush1.msra.mxu0 0.0
    %1021 = vmatprep.subr.mxu0 0.0
    %1022 = vmatpush1.msra.mxu0 0.0
    %1023 = vmatprep.subr.mxu0 0.0
    %1024 = vmatpush1.msra.mxu0 0.0
    %1025 = vmatprep.subr.mxu0 0.0
    %1026 = vmatpush1.msra.mxu0 0.0
    %1027 = vmatprep.subr.mxu0 0.0
    %1028 = vmatpush1.msra.mxu0 0.0
    %1029 = vmatprep.subr.mxu0 0.0
    %1030 = vmatpush1.msra.mxu0 0.0
    %1031 = vmatprep.subr.mxu0 0.0
    %1032 = vmatpush1.msra.mxu0 0.0
    %1033 = vmatprep.subr.mxu0 0.0
    %1034 = vmatpush1.msra.mxu0 0.0
    %1035 = vmatprep.subr.mxu0 0.0
    %1036 = vmatpush1.msra.mxu0 0.0
    %1037 = vmatprep.subr.mxu0 0.0
    %1038 = vmatpush1.msra.mxu0 0.0
    %1039 = vmatprep.subr.mxu0 0.0
    %1040 = vmatpush1.msra.mxu0 0.0
    %1041 = vmatprep.subr.mxu0 0.0
    %1042 = vmatpush1.msra.mxu0 0.0
    %1043 = vmatprep.subr.mxu0 0.0
    %1044 = vmatpush1.msra.mxu0 0.0
    %1045 = vmatprep.subr.mxu0 0.0
    %1046 = vmatpush1.msra.mxu0 0.0
    %1047 = vmatprep.subr.mxu0 0.0
    %1048 = vmatpush1.msra.mxu0 0.0
    %1049 = vmatprep.subr.mxu0 0.0
    %1050 = vmatpush1.msra.mxu0 0.0
    %1051 = vmatprep.subr.mxu0 0.0
    %1052 = vmatpush1.msra.mxu0 0.0
    %1053 = vmatprep.subr.mxu0 0.0
    %1054 = vmatpush1.msra.mxu0 0.0
    %1055 = vmatprep.mubr.f32.mxu0 0.0
    %1056 = vmatmul.mubr.f32.gmra.mrb[0].mxu0 %v146
    %v1057 = vpop.f32.mrb[0].mxu0
    %v1058 = vadd.f32 0.0, %v1057
    %v1059 = vpop.f32.mrb[0].mxu0
    %1060 = vmatprep.mubr.f32.mxu0 0.0
    %1061 = vmatmul.mubr.f32.gmra.mrb[0].mxu0 %v149
    %v1062 = vpop.f32.mrb[0].mxu0
    %v1063 = vadd.f32 0.0, %v1062
    %v1064 = vpop.f32.mrb[0].mxu0
    %1065 = vmatprep.mubr.f32.mxu0 0.0
    %1066 = vmatmul.mubr.f32.gmra.mrb[0].mxu0 %v152
    %v1067 = vpop.f32.mrb[0].mxu0
    %v1068 = vadd.f32 0.0, %v1067
    %v1069 = vpop.f32.mrb[0].mxu0
    %1070 = vmatprep.mubr.f32.mxu0 0.0
    %1071 = vmatmul.mubr.f32.gmra.mrb[0].mxu0 %v155
    %v1072 = vpop.f32.mrb[0].mxu0
    %v1073 = vadd.f32 0.0, %v1072
    %v1074 = vpop.f32.mrb[0].mxu0
    %1075 = vdwg.mxu0
    %v1076 = vpack.c.bf16 %v1063, %v1058
    %v1077 = vpack.c.bf16 %v1073, %v1068
    %1079 = vset.pattern.permute.xlu0 0
    %1080 = vperm.xlu0 %1079, %v1076
    %v1081 = vpop.permute.xlu0 %1080
    %1084 = vset.pattern.permute.xlu0 0
    %1085 = vperm.xlu0 %1084, %v1077
    %v1086 = vpop.permute.xlu0 %1085
    %v1088 = vmul.bf16 %v1081, %v327
    %v1089 = vmul.bf16 %v1086, %v328
    %1090 = vset.pattern.permute.xlu0 1
    %1091 = vperm.xlu0 %1090, %v1076
    %v1092 = vpop.permute.xlu0 %1091
    %1094 = vset.pattern.permute.xlu0 1
    %1095 = vperm.xlu0 %1094, %v1077
    %v1096 = vpop.permute.xlu0 %1095
    %v1098 = vmul.bf16 %v1092, %v327
    %v1099 = vmul.bf16 %v1096, %v328
    %1100 = vset.pattern.permute.xlu0 2
    %1101 = vperm.xlu0 %1100, %v1076
    %v1102 = vpop.permute.xlu0 %1101
    %1104 = vset.pattern.permute.xlu0 2
    %1105 = vperm.xlu0 %1104, %v1077
    %v1106 = vpop.permute.xlu0 %1105
    %v1108 = vmul.bf16 %v1102, %v327
    %v1109 = vmul.bf16 %v1106, %v328
    %1110 = vset.pattern.permute.xlu0 3
    %1111 = vperm.xlu0 %1110, %v1076
    %v1112 = vpop.permute.xlu0 %1111
    %1114 = vset.pattern.permute.xlu0 3
    %1115 = vperm.xlu0 %1114, %v1077
    %v1116 = vpop.permute.xlu0 %1115
    %v1118 = vmul.bf16 %v1112, %v327
    %v1119 = vmul.bf16 %v1116, %v328
    %1120 = vset.pattern.permute.xlu0 4
    %1121 = vperm.xlu0 %1120, %v1076
    %v1122 = vpop.permute.xlu0 %1121
    %1124 = vset.pattern.permute.xlu0 4
    %1125 = vperm.xlu0 %1124, %v1077
    %v1126 = vpop.permute.xlu0 %1125
    %v1128 = vmul.bf16 %v1122, %v327
    %v1129 = vmul.bf16 %v1126, %v328
    %1130 = vset.pattern.permute.xlu0 5
    %1131 = vperm.xlu0 %1130, %v1076
    %v1132 = vpop.permute.xlu0 %1131
    %1134 = vset.pattern.permute.xlu0 5
    %1135 = vperm.xlu0 %1134, %v1077
    %v1136 = vpop.permute.xlu0 %1135
    %v1138 = vmul.bf16 %v1132, %v327
    %v1139 = vmul.bf16 %v1136, %v328
    %1140 = vset.pattern.permute.xlu0 6
    %1141 = vperm.xlu0 %1140, %v1076
    %v1142 = vpop.permute.xlu0 %1141
    %1144 = vset.pattern.permute.xlu0 6
    %1145 = vperm.xlu0 %1144, %v1077
    %v1146 = vpop.permute.xlu0 %1145
    %v1148 = vmul.bf16 %v1142, %v327
    %v1149 = vmul.bf16 %v1146, %v328
    %1150 = vset.pattern.permute.xlu0 7
    %1151 = vperm.xlu0 %1150, %v1076
    %v1152 = vpop.permute.xlu0 %1151
    %1154 = vset.pattern.permute.xlu0 7
    %1155 = vperm.xlu0 %1154, %v1077
    %v1156 = vpop.permute.xlu0 %1155
    %v1158 = vmul.bf16 %v1152, %v327
    %v1159 = vmul.bf16 %v1156, %v328
    %v1160 = vld [vmem:[#allocation5] sm:$0xf]
    %v1161 = vld [vmem:[#allocation5 + $0x4] sm:$0xf]
    %v1162 = vld [vmem:[#allocation5 + $0x8] sm:$0xf]
    %v1163 = vld [vmem:[#allocation5 + $0xc] sm:$0xf]
    %v1164 = vld [vmem:[#allocation5 + $0x10] sm:$0xf]
    %v1165 = vld [vmem:[#allocation5 + $0x14] sm:$0xf]
    %v1166 = vld [vmem:[#allocation5 + $0x18] sm:$0xf]
    %v1167 = vld [vmem:[#allocation5 + $0x1c] sm:$0xf]
    %v1168 = vld [vmem:[#allocation5 + $0x20] sm:$0xf]
    %v1169 = vld [vmem:[#allocation5 + $0x24] sm:$0xf]
    %v1170 = vld [vmem:[#allocation5 + $0x28] sm:$0xf]
    %v1171 = vld [vmem:[#allocation5 + $0x2c] sm:$0xf]
    %v1172 = vld [vmem:[#allocation5 + $0x30] sm:$0xf]
    %v1173 = vld [vmem:[#allocation5 + $0x34] sm:$0xf]
    %v1174 = vld [vmem:[#allocation5 + $0x38] sm:$0xf]
    %v1175 = vld [vmem:[#allocation5 + $0x3c] sm:$0xf]
    %v1176 = vld [vmem:[#allocation5 + $0x40] sm:$0xf]
    %v1177 = vld [vmem:[#allocation5 + $0x44] sm:$0xf]
    %v1178 = vld [vmem:[#allocation5 + $0x48] sm:$0xf]
    %v1179 = vld [vmem:[#allocation5 + $0x4c] sm:$0xf]
    %v1180 = vld [vmem:[#allocation5 + $0x50] sm:$0xf]
    %v1181 = vld [vmem:[#allocation5 + $0x54] sm:$0xf]
    %v1182 = vld [vmem:[#allocation5 + $0x58] sm:$0xf]
    %v1183 = vld [vmem:[#allocation5 + $0x5c] sm:$0xf]
    %v1184 = vld [vmem:[#allocation5 + $0x60] sm:$0xf]
    %v1185 = vld [vmem:[#allocation5 + $0x64] sm:$0xf]
    %v1186 = vld [vmem:[#allocation5 + $0x68] sm:$0xf]
    %v1187 = vld [vmem:[#allocation5 + $0x6c] sm:$0xf]
    %v1188 = vld [vmem:[#allocation5 + $0x70] sm:$0xf]
    %v1189 = vld [vmem:[#allocation5 + $0x74] sm:$0xf]
    %v1190 = vld [vmem:[#allocation5 + $0x78] sm:$0xf]
    %v1191 = vld [vmem:[#allocation5 + $0x7c] sm:$0xf]
    %v1192 = vld [vmem:[#allocation5 + $0x80] sm:$0xf]
    %v1193 = vld [vmem:[#allocation5 + $0x84] sm:$0xf]
    %v1194 = vld [vmem:[#allocation5 + $0x88] sm:$0xf]
    %v1195 = vld [vmem:[#allocation5 + $0x8c] sm:$0xf]
    %v1196 = vld [vmem:[#allocation5 + $0x90] sm:$0xf]
    %v1197 = vld [vmem:[#allocation5 + $0x94] sm:$0xf]
    %v1198 = vld [vmem:[#allocation5 + $0x98] sm:$0xf]
    %v1199 = vld [vmem:[#allocation5 + $0x9c] sm:$0xf]
    %v1200 = vld [vmem:[#allocation5 + $0xa0] sm:$0xf]
    %v1201 = vld [vmem:[#allocation5 + $0xa4] sm:$0xf]
    %v1202 = vld [vmem:[#allocation5 + $0xa8] sm:$0xf]
    %v1203 = vld [vmem:[#allocation5 + $0xac] sm:$0xf]
    %v1204 = vld [vmem:[#allocation5 + $0xb0] sm:$0xf]
    %v1205 = vld [vmem:[#allocation5 + $0xb4] sm:$0xf]
    %v1206 = vld [vmem:[#allocation5 + $0xb8] sm:$0xf]
    %v1207 = vld [vmem:[#allocation5 + $0xbc] sm:$0xf]
    %v1208 = vld [vmem:[#allocation5 + $0xc0] sm:$0xf]
    %v1209 = vld [vmem:[#allocation5 + $0xc4] sm:$0xf]
    %v1210 = vld [vmem:[#allocation5 + $0xc8] sm:$0xf]
    %v1211 = vld [vmem:[#allocation5 + $0xcc] sm:$0xf]
    %v1212 = vld [vmem:[#allocation5 + $0xd0] sm:$0xf]
    %v1213 = vld [vmem:[#allocation5 + $0xd4] sm:$0xf]
    %v1214 = vld [vmem:[#allocation5 + $0xd8] sm:$0xf]
    %v1215 = vld [vmem:[#allocation5 + $0xdc] sm:$0xf]
    %v1216 = vld [vmem:[#allocation5 + $0xe0] sm:$0xf]
    %v1217 = vld [vmem:[#allocation5 + $0xe4] sm:$0xf]
    %v1218 = vld [vmem:[#allocation5 + $0xe8] sm:$0xf]
    %v1219 = vld [vmem:[#allocation5 + $0xec] sm:$0xf]
    %v1220 = vld [vmem:[#allocation5 + $0xf0] sm:$0xf]
    %v1221 = vld [vmem:[#allocation5 + $0xf4] sm:$0xf]
    %v1222 = vld [vmem:[#allocation5 + $0xf8] sm:$0xf]
    %v1223 = vld [vmem:[#allocation5 + $0xfc] sm:$0xf]
    %v1224 = vld [vmem:[#allocation5 + $0x100] sm:$0xf]
    %v1225 = vld [vmem:[#allocation5 + $0x104] sm:$0xf]
    %v1226 = vld [vmem:[#allocation5 + $0x108] sm:$0xf]
    %v1227 = vld [vmem:[#allocation5 + $0x10c] sm:$0xf]
    %v1228 = vld [vmem:[#allocation5 + $0x110] sm:$0xf]
    %v1229 = vld [vmem:[#allocation5 + $0x114] sm:$0xf]
    %v1230 = vld [vmem:[#allocation5 + $0x118] sm:$0xf]
    %v1231 = vld [vmem:[#allocation5 + $0x11c] sm:$0xf]
    %v1232 = vld [vmem:[#allocation5 + $0x120] sm:$0xf]
    %v1233 = vld [vmem:[#allocation5 + $0x124] sm:$0xf]
    %v1234 = vld [vmem:[#allocation5 + $0x128] sm:$0xf]
    %v1235 = vld [vmem:[#allocation5 + $0x12c] sm:$0xf]
    %v1236 = vld [vmem:[#allocation5 + $0x130] sm:$0xf]
    %v1237 = vld [vmem:[#allocation5 + $0x134] sm:$0xf]
    %v1238 = vld [vmem:[#allocation5 + $0x138] sm:$0xf]
    %v1239 = vld [vmem:[#allocation5 + $0x13c] sm:$0xf]
    %v1240 = vld [vmem:[#allocation5 + $0x140] sm:$0xf]
    %v1241 = vld [vmem:[#allocation5 + $0x144] sm:$0xf]
    %v1242 = vld [vmem:[#allocation5 + $0x148] sm:$0xf]
    %v1243 = vld [vmem:[#allocation5 + $0x14c] sm:$0xf]
    %v1244 = vld [vmem:[#allocation5 + $0x150] sm:$0xf]
    %v1245 = vld [vmem:[#allocation5 + $0x154] sm:$0xf]
    %v1246 = vld [vmem:[#allocation5 + $0x158] sm:$0xf]
    %v1247 = vld [vmem:[#allocation5 + $0x15c] sm:$0xf]
    %v1248 = vld [vmem:[#allocation5 + $0x160] sm:$0xf]
    %v1249 = vld [vmem:[#allocation5 + $0x164] sm:$0xf]
    %v1250 = vld [vmem:[#allocation5 + $0x168] sm:$0xf]
    %v1251 = vld [vmem:[#allocation5 + $0x16c] sm:$0xf]
    %v1252 = vld [vmem:[#allocation5 + $0x170] sm:$0xf]
    %v1253 = vld [vmem:[#allocation5 + $0x174] sm:$0xf]
    %v1254 = vld [vmem:[#allocation5 + $0x178] sm:$0xf]
    %v1255 = vld [vmem:[#allocation5 + $0x17c] sm:$0xf]
    %v1256 = vld [vmem:[#allocation5 + $0x180] sm:$0xf]
    %v1257 = vld [vmem:[#allocation5 + $0x184] sm:$0xf]
    %v1258 = vld [vmem:[#allocation5 + $0x188] sm:$0xf]
    %v1259 = vld [vmem:[#allocation5 + $0x18c] sm:$0xf]
    %v1260 = vld [vmem:[#allocation5 + $0x190] sm:$0xf]
    %v1261 = vld [vmem:[#allocation5 + $0x194] sm:$0xf]
    %v1262 = vld [vmem:[#allocation5 + $0x198] sm:$0xf]
    %v1263 = vld [vmem:[#allocation5 + $0x19c] sm:$0xf]
    %v1264 = vld [vmem:[#allocation5 + $0x1a0] sm:$0xf]
    %v1265 = vld [vmem:[#allocation5 + $0x1a4] sm:$0xf]
    %v1266 = vld [vmem:[#allocation5 + $0x1a8] sm:$0xf]
    %v1267 = vld [vmem:[#allocation5 + $0x1ac] sm:$0xf]
    %v1268 = vld [vmem:[#allocation5 + $0x1b0] sm:$0xf]
    %v1269 = vld [vmem:[#allocation5 + $0x1b4] sm:$0xf]
    %v1270 = vld [vmem:[#allocation5 + $0x1b8] sm:$0xf]
    %v1271 = vld [vmem:[#allocation5 + $0x1bc] sm:$0xf]
    %v1272 = vld [vmem:[#allocation5 + $0x1c0] sm:$0xf]
    %v1273 = vld [vmem:[#allocation5 + $0x1c4] sm:$0xf]
    %v1274 = vld [vmem:[#allocation5 + $0x1c8] sm:$0xf]
    %v1275 = vld [vmem:[#allocation5 + $0x1cc] sm:$0xf]
    %v1276 = vld [vmem:[#allocation5 + $0x1d0] sm:$0xf]
    %v1277 = vld [vmem:[#allocation5 + $0x1d4] sm:$0xf]
    %v1278 = vld [vmem:[#allocation5 + $0x1d8] sm:$0xf]
    %v1279 = vld [vmem:[#allocation5 + $0x1dc] sm:$0xf]
    %v1280 = vld [vmem:[#allocation5 + $0x1e0] sm:$0xf]
    %v1281 = vld [vmem:[#allocation5 + $0x1e4] sm:$0xf]
    %v1282 = vld [vmem:[#allocation5 + $0x1e8] sm:$0xf]
    %v1283 = vld [vmem:[#allocation5 + $0x1ec] sm:$0xf]
    %v1284 = vld [vmem:[#allocation5 + $0x1f0] sm:$0xf]
    %v1285 = vld [vmem:[#allocation5 + $0x1f4] sm:$0xf]
    %v1286 = vld [vmem:[#allocation5 + $0x1f8] sm:$0xf]
    %v1287 = vld [vmem:[#allocation5 + $0x1fc] sm:$0xf]
    %v1416 = vunpack.c.l.b16 %v1160
    %v1417 = vunpack.c.l.b16 %v1161
    %v1418 = vunpack.c.l.b16 %v1162
    %v1419 = vunpack.c.l.b16 %v1163
    %v1420 = vunpack.c.l.b16 %v1164
    %v1421 = vunpack.c.l.b16 %v1165
    %v1422 = vunpack.c.l.b16 %v1166
    %v1423 = vunpack.c.l.b16 %v1167
    %v1424 = vunpack.c.l.b16 %v1168
    %v1425 = vunpack.c.l.b16 %v1169
    %v1426 = vunpack.c.l.b16 %v1170
    %v1427 = vunpack.c.l.b16 %v1171
    %v1428 = vunpack.c.l.b16 %v1172
    %v1429 = vunpack.c.l.b16 %v1173
    %v1430 = vunpack.c.l.b16 %v1174
    %v1431 = vunpack.c.l.b16 %v1175
    %v1432 = vunpack.c.l.b16 %v1176
    %v1433 = vunpack.c.l.b16 %v1177
    %v1434 = vunpack.c.l.b16 %v1178
    %v1435 = vunpack.c.l.b16 %v1179
    %v1436 = vunpack.c.l.b16 %v1180
    %v1437 = vunpack.c.l.b16 %v1181
    %v1438 = vunpack.c.l.b16 %v1182
    %v1439 = vunpack.c.l.b16 %v1183
    %v1440 = vunpack.c.l.b16 %v1184
    %v1441 = vunpack.c.l.b16 %v1185
    %v1442 = vunpack.c.l.b16 %v1186
    %v1443 = vunpack.c.l.b16 %v1187
    %v1444 = vunpack.c.l.b16 %v1188
    %v1445 = vunpack.c.l.b16 %v1189
    %v1446 = vunpack.c.l.b16 %v1190
    %v1447 = vunpack.c.l.b16 %v1191
    %v1448 = vunpack.c.l.b16 %v1192
    %v1449 = vunpack.c.l.b16 %v1193
    %v1450 = vunpack.c.l.b16 %v1194
    %v1451 = vunpack.c.l.b16 %v1195
    %v1452 = vunpack.c.l.b16 %v1196
    %v1453 = vunpack.c.l.b16 %v1197
    %v1454 = vunpack.c.l.b16 %v1198
    %v1455 = vunpack.c.l.b16 %v1199
    %v1456 = vunpack.c.l.b16 %v1200
    %v1457 = vunpack.c.l.b16 %v1201
    %v1458 = vunpack.c.l.b16 %v1202
    %v1459 = vunpack.c.l.b16 %v1203
    %v1460 = vunpack.c.l.b16 %v1204
    %v1461 = vunpack.c.l.b16 %v1205
    %v1462 = vunpack.c.l.b16 %v1206
    %v1463 = vunpack.c.l.b16 %v1207
    %v1464 = vunpack.c.l.b16 %v1208
    %v1465 = vunpack.c.l.b16 %v1209
    %v1466 = vunpack.c.l.b16 %v1210
    %v1467 = vunpack.c.l.b16 %v1211
    %v1468 = vunpack.c.l.b16 %v1212
    %v1469 = vunpack.c.l.b16 %v1213
    %v1470 = vunpack.c.l.b16 %v1214
    %v1471 = vunpack.c.l.b16 %v1215
    %v1472 = vunpack.c.l.b16 %v1216
    %v1473 = vunpack.c.l.b16 %v1217
    %v1474 = vunpack.c.l.b16 %v1218
    %v1475 = vunpack.c.l.b16 %v1219
    %v1476 = vunpack.c.l.b16 %v1220
    %v1477 = vunpack.c.l.b16 %v1221
    %v1478 = vunpack.c.l.b16 %v1222
    %v1479 = vunpack.c.l.b16 %v1223
    %v1480 = vunpack.c.l.b16 %v1224
    %v1481 = vunpack.c.l.b16 %v1225
    %v1482 = vunpack.c.l.b16 %v1226
    %v1483 = vunpack.c.l.b16 %v1227
    %v1484 = vunpack.c.l.b16 %v1228
    %v1485 = vunpack.c.l.b16 %v1229
    %v1486 = vunpack.c.l.b16 %v1230
    %v1487 = vunpack.c.l.b16 %v1231
    %v1488 = vunpack.c.l.b16 %v1232
    %v1489 = vunpack.c.l.b16 %v1233
    %v1490 = vunpack.c.l.b16 %v1234
    %v1491 = vunpack.c.l.b16 %v1235
    %v1492 = vunpack.c.l.b16 %v1236
    %v1493 = vunpack.c.l.b16 %v1237
    %v1494 = vunpack.c.l.b16 %v1238
    %v1495 = vunpack.c.l.b16 %v1239
    %v1496 = vunpack.c.l.b16 %v1240
    %v1497 = vunpack.c.l.b16 %v1241
    %v1498 = vunpack.c.l.b16 %v1242
    %v1499 = vunpack.c.l.b16 %v1243
    %v1500 = vunpack.c.l.b16 %v1244
    %v1501 = vunpack.c.l.b16 %v1245
    %v1502 = vunpack.c.l.b16 %v1246
    %v1503 = vunpack.c.l.b16 %v1247
    %v1504 = vunpack.c.l.b16 %v1248
    %v1505 = vunpack.c.l.b16 %v1249
    %v1506 = vunpack.c.l.b16 %v1250
    %v1507 = vunpack.c.l.b16 %v1251
    %v1508 = vunpack.c.l.b16 %v1252
    %v1509 = vunpack.c.l.b16 %v1253
    %v1510 = vunpack.c.l.b16 %v1254
    %v1511 = vunpack.c.l.b16 %v1255
    %v1512 = vunpack.c.l.b16 %v1256
    %v1513 = vunpack.c.l.b16 %v1257
    %v1514 = vunpack.c.l.b16 %v1258
    %v1515 = vunpack.c.l.b16 %v1259
    %v1516 = vunpack.c.l.b16 %v1260
    %v1517 = vunpack.c.l.b16 %v1261
    %v1518 = vunpack.c.l.b16 %v1262
    %v1519 = vunpack.c.l.b16 %v1263
    %v1520 = vunpack.c.l.b16 %v1264
    %v1521 = vunpack.c.l.b16 %v1265
    %v1522 = vunpack.c.l.b16 %v1266
    %v1523 = vunpack.c.l.b16 %v1267
    %v1524 = vunpack.c.l.b16 %v1268
    %v1525 = vunpack.c.l.b16 %v1269
    %v1526 = vunpack.c.l.b16 %v1270
    %v1527 = vunpack.c.l.b16 %v1271
    %v1528 = vunpack.c.l.b16 %v1272
    %v1529 = vunpack.c.l.b16 %v1273
    %v1530 = vunpack.c.l.b16 %v1274
    %v1531 = vunpack.c.l.b16 %v1275
    %v1532 = vunpack.c.l.b16 %v1276
    %v1533 = vunpack.c.l.b16 %v1277
    %v1534 = vunpack.c.l.b16 %v1278
    %v1535 = vunpack.c.l.b16 %v1279
    %v1536 = vunpack.c.l.b16 %v1280
    %v1537 = vunpack.c.l.b16 %v1281
    %v1538 = vunpack.c.l.b16 %v1282
    %v1539 = vunpack.c.l.b16 %v1283
    %v1540 = vunpack.c.l.b16 %v1284
    %v1541 = vunpack.c.l.b16 %v1285
    %v1542 = vunpack.c.l.b16 %v1286
    %v1543 = vunpack.c.l.b16 %v1287
    %v1544 = vpack.c.b16 %v1417, %v1416
    %v1545 = vpack.c.b16 %v1419, %v1418
    %v1546 = vpack.c.b16 %v1421, %v1420
    %v1547 = vpack.c.b16 %v1423, %v1422
    %v1548 = vpack.c.b16 %v1425, %v1424
    %v1549 = vpack.c.b16 %v1427, %v1426
    %v1550 = vpack.c.b16 %v1429, %v1428
    %v1551 = vpack.c.b16 %v1431, %v1430
    %v1552 = vpack.c.b16 %v1433, %v1432
    %v1553 = vpack.c.b16 %v1435, %v1434
    %v1554 = vpack.c.b16 %v1437, %v1436
    %v1555 = vpack.c.b16 %v1439, %v1438
    %v1556 = vpack.c.b16 %v1441, %v1440
    %v1557 = vpack.c.b16 %v1443, %v1442
    %v1558 = vpack.c.b16 %v1445, %v1444
    %v1559 = vpack.c.b16 %v1447, %v1446
    %v1560 = vpack.c.b16 %v1449, %v1448
    %v1561 = vpack.c.b16 %v1451, %v1450
    %v1562 = vpack.c.b16 %v1453, %v1452
    %v1563 = vpack.c.b16 %v1455, %v1454
    %v1564 = vpack.c.b16 %v1457, %v1456
    %v1565 = vpack.c.b16 %v1459, %v1458
    %v1566 = vpack.c.b16 %v1461, %v1460
    %v1567 = vpack.c.b16 %v1463, %v1462
    %v1568 = vpack.c.b16 %v1465, %v1464
    %v1569 = vpack.c.b16 %v1467, %v1466
    %v1570 = vpack.c.b16 %v1469, %v1468
    %v1571 = vpack.c.b16 %v1471, %v1470
    %v1572 = vpack.c.b16 %v1473, %v1472
    %v1573 = vpack.c.b16 %v1475, %v1474
    %v1574 = vpack.c.b16 %v1477, %v1476
    %v1575 = vpack.c.b16 %v1479, %v1478
    %v1576 = vpack.c.b16 %v1481, %v1480
    %v1577 = vpack.c.b16 %v1483, %v1482
    %v1578 = vpack.c.b16 %v1485, %v1484
    %v1579 = vpack.c.b16 %v1487, %v1486
    %v1580 = vpack.c.b16 %v1489, %v1488
    %v1581 = vpack.c.b16 %v1491, %v1490
    %v1582 = vpack.c.b16 %v1493, %v1492
    %v1583 = vpack.c.b16 %v1495, %v1494
    %v1584 = vpack.c.b16 %v1497, %v1496
    %v1585 = vpack.c.b16 %v1499, %v1498
    %v1586 = vpack.c.b16 %v1501, %v1500
    %v1587 = vpack.c.b16 %v1503, %v1502
    %v1588 = vpack.c.b16 %v1505, %v1504
    %v1589 = vpack.c.b16 %v1507, %v1506
    %v1590 = vpack.c.b16 %v1509, %v1508
    %v1591 = vpack.c.b16 %v1511, %v1510
    %v1592 = vpack.c.b16 %v1513, %v1512
    %v1593 = vpack.c.b16 %v1515, %v1514
    %v1594 = vpack.c.b16 %v1517, %v1516
    %v1595 = vpack.c.b16 %v1519, %v1518
    %v1596 = vpack.c.b16 %v1521, %v1520
    %v1597 = vpack.c.b16 %v1523, %v1522
    %v1598 = vpack.c.b16 %v1525, %v1524
    %v1599 = vpack.c.b16 %v1527, %v1526
    %v1600 = vpack.c.b16 %v1529, %v1528
    %v1601 = vpack.c.b16 %v1531, %v1530
    %v1602 = vpack.c.b16 %v1533, %v1532
    %v1603 = vpack.c.b16 %v1535, %v1534
    %v1604 = vpack.c.b16 %v1537, %v1536
    %v1605 = vpack.c.b16 %v1539, %v1538
    %v1606 = vpack.c.b16 %v1541, %v1540
    %v1607 = vpack.c.b16 %v1543, %v1542
    %1672 = vmatprep.subr.bf16.mxu0 0
    %1673 = vmatpush1.bf16.msra.mxu0 %v1544
    %1674 = vmatprep.subr.bf16.mxu0 0
    %1675 = vmatpush1.bf16.msra.mxu0 %v1545
    %1676 = vmatprep.subr.bf16.mxu0 0
    %1677 = vmatpush1.bf16.msra.mxu0 %v1546
    %1678 = vmatprep.subr.bf16.mxu0 0
    %1679 = vmatpush1.bf16.msra.mxu0 %v1547
    %1680 = vmatprep.subr.bf16.mxu0 0
    %1681 = vmatpush1.bf16.msra.mxu0 %v1548
    %1682 = vmatprep.subr.bf16.mxu0 0
    %1683 = vmatpush1.bf16.msra.mxu0 %v1549
    %1684 = vmatprep.subr.bf16.mxu0 0
    %1685 = vmatpush1.bf16.msra.mxu0 %v1550
    %1686 = vmatprep.subr.bf16.mxu0 0
    %1687 = vmatpush1.bf16.msra.mxu0 %v1551
    %1688 = vmatprep.subr.bf16.mxu0 0
    %1689 = vmatpush1.bf16.msra.mxu0 %v1552
    %1690 = vmatprep.subr.bf16.mxu0 0
    %1691 = vmatpush1.bf16.msra.mxu0 %v1553
    %1692 = vmatprep.subr.bf16.mxu0 0
    %1693 = vmatpush1.bf16.msra.mxu0 %v1554
    %1694 = vmatprep.subr.bf16.mxu0 0
    %1695 = vmatpush1.bf16.msra.mxu0 %v1555
    %1696 = vmatprep.subr.bf16.mxu0 0
    %1697 = vmatpush1.bf16.msra.mxu0 %v1556
    %1698 = vmatprep.subr.bf16.mxu0 0
    %1699 = vmatpush1.bf16.msra.mxu0 %v1557
    %1700 = vmatprep.subr.bf16.mxu0 0
    %1701 = vmatpush1.bf16.msra.mxu0 %v1558
    %1702 = vmatprep.subr.bf16.mxu0 0
    %1703 = vmatpush1.bf16.msra.mxu0 %v1559
    %1704 = vmatprep.mubr.bf16.mxu0 %v1098
    %1705 = vmatmul.mubr.bf16.gmra.mrb[0].mxu0 %v1088
    %v1706 = vpop.f32.mrb[0].mxu0
    %v1707 = vadd.f32 0.0, %v1706
    %v1708 = vpop.f32.mrb[0].mxu0
    %v1709 = vpop.f32.mrb[0].mxu0
    %v1710 = vadd.f32 0.0, %v1709
    %v1711 = vpop.f32.mrb[0].mxu0
    %1712 = vmatprep.mubr.bf16.mxu0 %v1099
    %1713 = vmatmul.mubr.bf16.gmra.mrb[0].mxu0 %v1089
    %v1714 = vpop.f32.mrb[0].mxu0
    %v1715 = vadd.f32 0.0, %v1714
    %v1716 = vpop.f32.mrb[0].mxu0
    %v1717 = vpop.f32.mrb[0].mxu0
    %v1718 = vadd.f32 0.0, %v1717
    %v1719 = vpop.f32.mrb[0].mxu0
    %1720 = vdwg.mxu0
    %1721 = vmatprep.subr.bf16.mxu0 0
    %1722 = vmatpush1.bf16.msra.mxu0 %v1560
    %1723 = vmatprep.subr.bf16.mxu0 0
    %1724 = vmatpush1.bf16.msra.mxu0 %v1561
    %1725 = vmatprep.subr.bf16.mxu0 0
    %1726 = vmatpush1.bf16.msra.mxu0 %v1562
    %1727 = vmatprep.subr.bf16.mxu0 0
    %1728 = vmatpush1.bf16.msra.mxu0 %v1563
    %1729 = vmatprep.subr.bf16.mxu0 0
    %1730 = vmatpush1.bf16.msra.mxu0 %v1564
    %1731 = vmatprep.subr.bf16.mxu0 0
    %1732 = vmatpush1.bf16.msra.mxu0 %v1565
    %1733 = vmatprep.subr.bf16.mxu0 0
    %1734 = vmatpush1.bf16.msra.mxu0 %v1566
    %1735 = vmatprep.subr.bf16.mxu0 0
    %1736 = vmatpush1.bf16.msra.mxu0 %v1567
    %1737 = vmatprep.subr.bf16.mxu0 0
    %1738 = vmatpush1.bf16.msra.mxu0 %v1568
    %1739 = vmatprep.subr.bf16.mxu0 0
    %1740 = vmatpush1.bf16.msra.mxu0 %v1569
    %1741 = vmatprep.subr.bf16.mxu0 0
    %1742 = vmatpush1.bf16.msra.mxu0 %v1570
    %1743 = vmatprep.subr.bf16.mxu0 0
    %1744 = vmatpush1.bf16.msra.mxu0 %v1571
    %1745 = vmatprep.subr.bf16.mxu0 0
    %1746 = vmatpush1.bf16.msra.mxu0 %v1572
    %1747 = vmatprep.subr.bf16.mxu0 0
    %1748 = vmatpush1.bf16.msra.mxu0 %v1573
    %1749 = vmatprep.subr.bf16.mxu0 0
    %1750 = vmatpush1.bf16.msra.mxu0 %v1574
    %1751 = vmatprep.subr.bf16.mxu0 0
    %1752 = vmatpush1.bf16.msra.mxu0 %v1575
    %1753 = vmatprep.mubr.bf16.mxu0 %v1118
    %1754 = vmatmul.mubr.bf16.gmra.mrb[0].mxu0 %v1108
    %v1755 = vpop.f32.mrb[0].mxu0
    %v1756 = vadd.f32 %v1707, %v1755
    %v1757 = vpop.f32.mrb[0].mxu0
    %v1758 = vpop.f32.mrb[0].mxu0
    %v1759 = vadd.f32 %v1710, %v1758
    %v1760 = vpop.f32.mrb[0].mxu0
    %1761 = vmatprep.mubr.bf16.mxu0 %v1119
    %1762 = vmatmul.mubr.bf16.gmra.mrb[0].mxu0 %v1109
    %v1763 = vpop.f32.mrb[0].mxu0
    %v1764 = vadd.f32 %v1715, %v1763
    %v1765 = vpop.f32.mrb[0].mxu0
    %v1766 = vpop.f32.mrb[0].mxu0
    %v1767 = vadd.f32 %v1718, %v1766
    %v1768 = vpop.f32.mrb[0].mxu0
    %1769 = vdwg.mxu0
    %1770 = vmatprep.subr.bf16.mxu0 0
    %1771 = vmatpush1.bf16.msra.mxu0 %v1576
    %1772 = vmatprep.subr.bf16.mxu0 0
    %1773 = vmatpush1.bf16.msra.mxu0 %v1577
    %1774 = vmatprep.subr.bf16.mxu0 0
    %1775 = vmatpush1.bf16.msra.mxu0 %v1578
    %1776 = vmatprep.subr.bf16.mxu0 0
    %1777 = vmatpush1.bf16.msra.mxu0 %v1579
    %1778 = vmatprep.subr.bf16.mxu0 0
    %1779 = vmatpush1.bf16.msra.mxu0 %v1580
    %1780 = vmatprep.subr.bf16.mxu0 0
    %1781 = vmatpush1.bf16.msra.mxu0 %v1581
    %1782 = vmatprep.subr.bf16.mxu0 0
    %1783 = vmatpush1.bf16.msra.mxu0 %v1582
    %1784 = vmatprep.subr.bf16.mxu0 0
    %1785 = vmatpush1.bf16.msra.mxu0 %v1583
    %1786 = vmatprep.subr.bf16.mxu0 0
    %1787 = vmatpush1.bf16.msra.mxu0 %v1584
    %1788 = vmatprep.subr.bf16.mxu0 0
    %1789 = vmatpush1.bf16.msra.mxu0 %v1585
    %1790 = vmatprep.subr.bf16.mxu0 0
    %1791 = vmatpush1.bf16.msra.mxu0 %v1586
    %1792 = vmatprep.subr.bf16.mxu0 0
    %1793 = vmatpush1.bf16.msra.mxu0 %v1587
    %1794 = vmatprep.subr.bf16.mxu0 0
    %1795 = vmatpush1.bf16.msra.mxu0 %v1588
    %1796 = vmatprep.subr.bf16.mxu0 0
    %1797 = vmatpush1.bf16.msra.mxu0 %v1589
    %1798 = vmatprep.subr.bf16.mxu0 0
    %1799 = vmatpush1.bf16.msra.mxu0 %v1590
    %1800 = vmatprep.subr.bf16.mxu0 0
    %1801 = vmatpush1.bf16.msra.mxu0 %v1591
    %1802 = vmatprep.mubr.bf16.mxu0 %v1138
    %1803 = vmatmul.mubr.bf16.gmra.mrb[0].mxu0 %v1128
    %v1804 = vpop.f32.mrb[0].mxu0
    %v1805 = vadd.f32 %v1756, %v1804
    %v1806 = vpop.f32.mrb[0].mxu0
    %v1807 = vpop.f32.mrb[0].mxu0
    %v1808 = vadd.f32 %v1759, %v1807
    %v1809 = vpop.f32.mrb[0].mxu0
    %1810 = vmatprep.mubr.bf16.mxu0 %v1139
    %1811 = vmatmul.mubr.bf16.gmra.mrb[0].mxu0 %v1129
    %v1812 = vpop.f32.mrb[0].mxu0
    %v1813 = vadd.f32 %v1764, %v1812
    %v1814 = vpop.f32.mrb[0].mxu0
    %v1815 = vpop.f32.mrb[0].mxu0
    %v1816 = vadd.f32 %v1767, %v1815
    %v1817 = vpop.f32.mrb[0].mxu0
    %1818 = vdwg.mxu0
    %1819 = vmatprep.subr.bf16.mxu0 0
    %1820 = vmatpush1.bf16.msra.mxu0 %v1592
    %1821 = vmatprep.subr.bf16.mxu0 0
    %1822 = vmatpush1.bf16.msra.mxu0 %v1593
    %1823 = vmatprep.subr.bf16.mxu0 0
    %1824 = vmatpush1.bf16.msra.mxu0 %v1594
    %1825 = vmatprep.subr.bf16.mxu0 0
    %1826 = vmatpush1.bf16.msra.mxu0 %v1595
    %1827 = vmatprep.subr.bf16.mxu0 0
    %1828 = vmatpush1.bf16.msra.mxu0 %v1596
    %1829 = vmatprep.subr.bf16.mxu0 0
    %1830 = vmatpush1.bf16.msra.mxu0 %v1597
    %1831 = vmatprep.subr.bf16.mxu0 0
    %1832 = vmatpush1.bf16.msra.mxu0 %v1598
    %1833 = vmatprep.subr.bf16.mxu0 0
    %1834 = vmatpush1.bf16.msra.mxu0 %v1599
    %1835 = vmatprep.subr.bf16.mxu0 0
    %1836 = vmatpush1.bf16.msra.mxu0 %v1600
    %1837 = vmatprep.subr.bf16.mxu0 0
    %1838 = vmatpush1.bf16.msra.mxu0 %v1601
    %1839 = vmatprep.subr.bf16.mxu0 0
    %1840 = vmatpush1.bf16.msra.mxu0 %v1602
    %1841 = vmatprep.subr.bf16.mxu0 0
    %1842 = vmatpush1.bf16.msra.mxu0 %v1603
    %1843 = vmatprep.subr.bf16.mxu0 0
    %1844 = vmatpush1.bf16.msra.mxu0 %v1604
    %1845 = vmatprep.subr.bf16.mxu0 0
    %1846 = vmatpush1.bf16.msra.mxu0 %v1605
    %1847 = vmatprep.subr.bf16.mxu0 0
    %1848 = vmatpush1.bf16.msra.mxu0 %v1606
    %1849 = vmatprep.subr.bf16.mxu0 0
    %1850 = vmatpush1.bf16.msra.mxu0 %v1607
    %1851 = vmatprep.mubr.bf16.mxu0 %v1158
    %1852 = vmatmul.mubr.bf16.gmra.mrb[0].mxu0 %v1148
    %v1853 = vpop.f32.mrb[0].mxu0
    %v1854 = vadd.f32 %v1805, %v1853
    %v1855 = vpop.f32.mrb[0].mxu0
    %v1856 = vpop.f32.mrb[0].mxu0
    %v1857 = vadd.f32 %v1808, %v1856
    %v1858 = vpop.f32.mrb[0].mxu0
    %1859 = vmatprep.mubr.bf16.mxu0 %v1159
    %1860 = vmatmul.mubr.bf16.gmra.mrb[0].mxu0 %v1149
    %v1861 = vpop.f32.mrb[0].mxu0
    %v1862 = vadd.f32 %v1813, %v1861
    %v1863 = vpop.f32.mrb[0].mxu0
    %v1864 = vpop.f32.mrb[0].mxu0
    %v1865 = vadd.f32 %v1816, %v1864
    %v1866 = vpop.f32.mrb[0].mxu0
    %1867 = vdwg.mxu0
    %1868 = vmatprep.subr.mxu0 0.0
    %1869 = vmatpush1.msra.mxu0 %v1854
    %1870 = vmatprep.subr.mxu0 0.0
    %1871 = vmatpush1.msra.mxu0 %v1857
    %1872 = vmatprep.subr.mxu0 0.0
    %1873 = vmatpush1.msra.mxu0 %v1862
    %1874 = vmatprep.subr.mxu0 0.0
    %1875 = vmatpush1.msra.mxu0 %v1865
    %1876 = vmatprep.subr.mxu0 0.0
    %1877 = vmatpush1.msra.mxu0 0.0
    %1878 = vmatprep.subr.mxu0 0.0
    %1879 = vmatpush1.msra.mxu0 0.0
    %1880 = vmatprep.subr.mxu0 0.0
    %1881 = vmatpush1.msra.mxu0 0.0
    %1882 = vmatprep.subr.mxu0 0.0
    %1883 = vmatpush1.msra.mxu0 0.0
    %1884 = vmatprep.subr.mxu0 0.0
    %1885 = vmatpush1.msra.mxu0 0.0
    %1886 = vmatprep.subr.mxu0 0.0
    %1887 = vmatpush1.msra.mxu0 0.0
    %1888 = vmatprep.subr.mxu0 0.0
    %1889 = vmatpush1.msra.mxu0 0.0
    %1890 = vmatprep.subr.mxu0 0.0
    %1891 = vmatpush1.msra.mxu0 0.0
    %1892 = vmatprep.subr.mxu0 0.0
    %1893 = vmatpush1.msra.mxu0 0.0
    %1894 = vmatprep.subr.mxu0 0.0
    %1895 = vmatpush1.msra.mxu0 0.0
    %1896 = vmatprep.subr.mxu0 0.0
    %1897 = vmatpush1.msra.mxu0 0.0
    %1898 = vmatprep.subr.mxu0 0.0
    %1899 = vmatpush1.msra.mxu0 0.0
    %1900 = vmatprep.subr.mxu0 0.0
    %1901 = vmatpush1.msra.mxu0 0.0
    %1902 = vmatprep.subr.mxu0 0.0
    %1903 = vmatpush1.msra.mxu0 0.0
    %1904 = vmatprep.subr.mxu0 0.0
    %1905 = vmatpush1.msra.mxu0 0.0
    %1906 = vmatprep.subr.mxu0 0.0
    %1907 = vmatpush1.msra.mxu0 0.0
    %1908 = vmatprep.subr.mxu0 0.0
    %1909 = vmatpush1.msra.mxu0 0.0
    %1910 = vmatprep.subr.mxu0 0.0
    %1911 = vmatpush1.msra.mxu0 0.0
    %1912 = vmatprep.subr.mxu0 0.0
    %1913 = vmatpush1.msra.mxu0 0.0
    %1914 = vmatprep.subr.mxu0 0.0
    %1915 = vmatpush1.msra.mxu0 0.0
    %1916 = vmatprep.subr.mxu0 0.0
    %1917 = vmatpush1.msra.mxu0 0.0
    %1918 = vmatprep.subr.mxu0 0.0
    %1919 = vmatpush1.msra.mxu0 0.0
    %1920 = vmatprep.subr.mxu0 0.0
    %1921 = vmatpush1.msra.mxu0 0.0
    %1922 = vmatprep.subr.mxu0 0.0
    %1923 = vmatpush1.msra.mxu0 0.0
    %1924 = vmatprep.subr.mxu0 0.0
    %1925 = vmatpush1.msra.mxu0 0.0
    %1926 = vmatprep.subr.mxu0 0.0
    %1927 = vmatpush1.msra.mxu0 0.0
    %1928 = vmatprep.subr.mxu0 0.0
    %1929 = vmatpush1.msra.mxu0 0.0
    %1930 = vmatprep.subr.mxu0 0.0
    %1931 = vmatpush1.msra.mxu0 0.0
    %1932 = vmatprep.mubr.f32.mxu0 0.0
    %1933 = vmatmul.mubr.f32.gmra.mrb[0].mxu0 %v776
    %v1934 = vpop.f32.mrb[0].mxu0
    %v1935 = vadd.f32 0.0, %v1934
    %v1936 = vpop.f32.mrb[0].mxu0
    %1937 = vmatprep.mubr.f32.mxu0 0.0
    %1938 = vmatmul.mubr.f32.gmra.mrb[0].mxu0 %v779
    %v1939 = vpop.f32.mrb[0].mxu0
    %v1940 = vadd.f32 0.0, %v1939
    %v1941 = vpop.f32.mrb[0].mxu0
    %1942 = vdwg.mxu0
    %v1943 = vmul.f32 %v1935, %v861
    %v1944 = vmul.f32 %v1940, %v866
    %v1945 = vpack.c.bf16 %v937, %v936
    %v1946 = vld [vmem:[%s11] sm:$0xf]
    %vm1947 = vcmask 64512
    %v1949 = vsel %vm1947, %v1945, 0
    %vm1951 = vcmask 1043456
    %v1953 = vsel %vm1951, %v1946, 0
    %1955 = vmatprep.subr.bf16.mxu0 0
    %1956 = vmatpush1.bf16.msra.mxu0 %v1953
    %1957 = vmatprep.subr.bf16.mxu0 0
    %1958 = vmatpush1.bf16.msra.mxu0 0
    %1959 = vmatprep.subr.bf16.mxu0 0
    %1960 = vmatpush1.bf16.msra.mxu0 0
    %1961 = vmatprep.subr.bf16.mxu0 0
    %1962 = vmatpush1.bf16.msra.mxu0 0
    %1963 = vmatprep.subr.bf16.mxu0 0
    %1964 = vmatpush1.bf16.msra.mxu0 0
    %1965 = vmatprep.subr.bf16.mxu0 0
    %1966 = vmatpush1.bf16.msra.mxu0 0
    %1967 = vmatprep.subr.bf16.mxu0 0
    %1968 = vmatpush1.bf16.msra.mxu0 0
    %1969 = vmatprep.subr.bf16.mxu0 0
    %1970 = vmatpush1.bf16.msra.mxu0 0
    %1971 = vmatprep.subr.bf16.mxu0 0
    %1972 = vmatpush1.bf16.msra.mxu0 0
    %1973 = vmatprep.subr.bf16.mxu0 0
    %1974 = vmatpush1.bf16.msra.mxu0 0
    %1975 = vmatprep.subr.bf16.mxu0 0
    %1976 = vmatpush1.bf16.msra.mxu0 0
    %1977 = vmatprep.subr.bf16.mxu0 0
    %1978 = vmatpush1.bf16.msra.mxu0 0
    %1979 = vmatprep.subr.bf16.mxu0 0
    %1980 = vmatpush1.bf16.msra.mxu0 0
    %1981 = vmatprep.subr.bf16.mxu0 0
    %1982 = vmatpush1.bf16.msra.mxu0 0
    %1983 = vmatprep.subr.bf16.mxu0 0
    %1984 = vmatpush1.bf16.msra.mxu0 0
    %1985 = vmatprep.subr.bf16.mxu0 0
    %1986 = vmatpush1.bf16.msra.mxu0 0
    %1987 = vmatprep.mubr.bf16.mxu0 0
    %1988 = vmatmul.mubr.bf16.gmra.mrb[0].mxu0 %v1949
    %v1989 = vpop.f32.mrb[0].mxu0
    %v1990 = vadd.f32 0.0, %v1989
    %v1991 = vpop.f32.mrb[0].mxu0
    %v1992 = vpop.f32.mrb[0].mxu0
    %v1993 = vadd.f32 0.0, %v1992
    %v1994 = vpop.f32.mrb[0].mxu0
    %1995 = vdwg.mxu0
    %v1996 = vadd.f32 %v1943, %v1990
    %v1997 = vadd.f32 %v1944, %v1993
    %v1998 = vld [vmem:[%s12] sm:$0x1]
    %v2000 = vlaneseq
    %v2001 = vshrl.u32 %v2000, 7
    %v2002 = vsub.s32 0, %v2001
    %v2003 = vrot.slane %v1998, %v2002
    %v2005 = vadd.f32 %v1996, %v2003
    %v2006 = vadd.f32 %v1997, %v2003
    %v2007 = vld [vmem:[%s13] sm:$0x1]
    %v2008 = vld [vmem:[%s14] sm:$0x1]
    %v2009 = vadd.f32 %v2005, %v2006
    %v2010 = vrot.slane %v2009, 4
    %v2011 = vadd.f32 %v2009, %v2010
    %v2012 = vrot.slane %v2011, 2
    %v2013 = vadd.f32 %v2011, %v2012
    %v2014 = vrot.slane %v2013, 1
    %v2015 = vadd.f32 %v2013, %v2014
    %v2016 = vmul.f32 %v2015, %v892
    %v2017 = vsub.f32 %v2005, %v2016
    %v2018 = vsub.f32 %v2006, %v2016
    %v2019 = vmul.f32 %v2017, %v2017
    %v2020 = vmul.f32 %v2018, %v2018
    %v2021 = vadd.f32 %v2019, %v2020
    %v2022 = vrot.slane %v2021, 4
    %v2023 = vadd.f32 %v2021, %v2022
    %v2024 = vrot.slane %v2023, 2
    %v2025 = vadd.f32 %v2023, %v2024
    %v2026 = vrot.slane %v2025, 1
    %v2027 = vadd.f32 %v2025, %v2026
    %v2028 = vmul.f32 %v2027, %v892
    %v2029 = vadd.f32 %v2028, 1e-05
    %v2030 = vrsqrt.pop %v2029
    %v2031 = vmul.f32 %v2017, %v2030
    %v2032 = vmul.f32 %v2018, %v2030
    %v2034 = vlaneseq
    %v2035 = vshrl.u32 %v2034, 7
    %v2036 = vsub.s32 0, %v2035
    %v2037 = vrot.slane %v2007, %v2036
    %v2039 = vmul.f32 %v2031, %v2037
    %v2040 = vmul.f32 %v2032, %v2037
    %v2042 = vlaneseq
    %v2043 = vshrl.u32 %v2042, 7
    %v2044 = vsub.s32 0, %v2043
    %v2045 = vrot.slane %v2008, %v2044
    %v2047 = vadd.f32 %v2039, %v2045
    %v2048 = vadd.f32 %v2040, %v2045
    %v2049 = vadd.f32 %v2047, %v989
    %v2050 = vadd.f32 %v2048, %v990
    %vm2051 = vcmp.gt.f32.partialorder %v2049, 0.0
    %vm2052 = vcmp.gt.f32.partialorder %v2050, 0.0
    %v2053 = vmin.f32 %v2049, 0.0
    %v2054 = vmin.f32 %v2050, 0.0
    %v2055 = vmul.f32 %v2053, 1.442695
    %v2056 = vpow.pop %v2055
    %v2057 = vmul.f32 %v2054, 1.442695
    %v2058 = vpow.pop %v2057
    %v2059 = vsub.f32 %v2056, 1.0
    %v2060 = vsub.f32 %v2058, 1.0
    %v2061 = vsel %vm2051, %v2049, %v2059
    %v2062 = vsel %vm2052, %v2050, %v2060
    %2063 = vst [vmem:[#allocation7] sm:$0xff] %v2061
    %2064 = vst [vmem:[#allocation7 + $0x8] sm:$0xff] %v2062
    // Predicated region
    $region86: #{tpu_custom_call.1} parent=1 // pred_check
      _
    $region87: #{tpu_custom_call.1} parent=1 // pred_check_branch
      %2066 = sbr.rel (0) target = $region89
    $region88: #{tpu_custom_call.1} parent=1 // pred_region
      %s2068 = ssub.s32 256, 256
      %2069 = vsyncadd [#allocation4], %s2068
      %s2070 = sshll.u32 [#allocation7], 4
      %s2071 = int_to_ptr.vmem [resolvable:$true] %s2070
      %2076 = dma.vmem_to_hbm [thread:$0]  %s2071, 256, %s19, [#allocation4], 128, 128, 8
    $region89: #{tpu_custom_call.1} parent=1 // pred_fallthru
      _
    // Predicated region
    $region90: #{tpu_custom_call.1} parent=1 // pred_check
      _
    $region91: #{tpu_custom_call.1} parent=1 // pred_check_branch
      %2078 = sbr.rel (0) target = $region93
    $region92: #{tpu_custom_call.1} parent=1 // pred_region
      %2079 = dma.done [#allocation4], 256
    $region93: #{tpu_custom_call.1} parent=1 // pred_fallthru
      _
    %2080 = vsyncpa [#allocation3], 1
    %2081 = vsyncpa [#allocation6], 1
    %2082 = vsyncpa [#allocation4], 1

</llo_original>
